<compile_context>
chip_gen: v6e
topology: v6e:2x2x1
jax: 0.10.0
libtpu: 0.0.40
codegen_flags: <defaults>
</compile_context>

<pallas_src>
import functools

import jax
import jax.numpy as jnp
from jax import lax
from jax.experimental import pallas as pl
from jax.experimental.pallas import tpu as pltpu  # noqa: F401  (TPU backend)


def _encoder_kernel(*refs, n_layers, seq_len, batch, hide):
    """Fused (embedding-folded) n_layers-deep LSTM.  All refs live in VMEM.

    refs layout:
      [x2d,
       (w_in_t, w_hh_t, bias)_layer0, ..., (w_in_t, w_hh_t, bias)_layer{L-1},
       out]            # out: (2L, B, H); rows [0:L] = hidden, [L:2L] = cell
    Gate column order inside every 4H block is (i, f, o, g)  -- reordered
    host-side so sigmoid covers one contiguous 3H span and tanh one H span.
    """
    S, B, H = seq_len, batch, hide
    x_ref = refs[0]
    layer_refs = refs[1:1 + 3 * n_layers]
    out_ref = refs[1 + 3 * n_layers]

    # Layer-0 input is the raw x (embedding Linear already folded into w_in_t).
    cur = x_ref[...].astype(jnp.float32)                          # (S*B, in_0)

    for l in range(n_layers):
        w_in_t = layer_refs[3 * l][...]                            # (in_l, 4H)
        w_hh_t = layer_refs[3 * l + 1][...]                        # (H, 4H)
        bias = layer_refs[3 * l + 2][...]                          # (1, 4H)
        last = (l == n_layers - 1)

        # Input projection for the whole sequence: one lane-dense matmul,
        # result kept in vregs (no scratch round trip).
        gates = jnp.dot(cur, w_in_t,
                        preferred_element_type=jnp.float32) + bias  # (S*B, 4H)

        h = jnp.zeros((B, H), jnp.float32)
        c = jnp.zeros((B, H), jnp.float32)
        hs = []
        for t in range(S):                      # fully unrolled, static slices
            g = gates[t * B:(t + 1) * B] + jnp.dot(
                h, w_hh_t, preferred_element_type=jnp.float32)      # (B, 4H)
            sig = jax.nn.sigmoid(g[:, :3 * H])   # i|f|o in one EUP pass
            i_g = sig[:, 0 * H:1 * H]
            f_g = sig[:, 1 * H:2 * H]
            o_g = sig[:, 2 * H:3 * H]
            g_g = jnp.tanh(g[:, 3 * H:4 * H])    # candidate cell, one EUP pass
            c = f_g * c + i_g * g_g
            h = o_g * jnp.tanh(c)
            if not last:                         # last layer's sequence unused
                hs.append(h)

        out_ref[l] = h.astype(out_ref.dtype)                 # final hidden
        out_ref[n_layers + l] = c.astype(out_ref.dtype)      # final cell

        if not last:
            # Next layer consumes this layer's full hidden sequence
            # (LSTM inter-layer dropout == identity in eval mode).
            cur = jnp.concatenate(hs, axis=0)                 # (S*B, H)


def encoder_forward(x, params):
    """Encoder.forward (eval mode).

    x: (seq_len, batch, features) float32 -- PyTorch nn.LSTM default layout.
    Returns (hidden, cell), each (n_layers, batch, hide_size) float32.
    """
    S, B, F = x.shape
    emb_w, emb_b = params["emb_w"], params["emb_b"]            # (E, F), (E,)
    layers = params["layers"]
    L = len(layers)
    H = layers[0]["w_hh"].shape[1]
    hp = lax.Precision.HIGHEST

    # Gate reorder: PyTorch rows (i, f, g, o) -> (i, f, o, g).
    perm = jnp.concatenate([jnp.arange(0, H), jnp.arange(H, 2 * H),
                            jnp.arange(3 * H, 4 * H), jnp.arange(2 * H, 3 * H)])

    # Host-side layout prep (free at trace time): reorder gates, transpose so
    # every in-kernel matmul is (rows, in) @ (in, 4H) with a 128-lane output,
    # fuse b_ih + b_hh, fold the embedding Linear into layer 0, keep biases
    # 2-D for clean tiling, flatten x to (S*B, F).
    inputs = [x.reshape(S * B, F)]
    for l, lp in enumerate(layers):
        w_ih = lp["w_ih"][perm]                                # (4H, in_l)
        w_hh = lp["w_hh"][perm]                                # (4H, H)
        b = (lp["b_ih"] + lp["b_hh"])[perm]                    # (4H,)
        if l == 0:
            # Fold embedding Linear (dropout == identity in eval):
            #   gates0 = x @ (emb_w.T @ w_ih.T) + (emb_b @ w_ih.T + b)
            w_in_t = jnp.dot(jnp.transpose(emb_w), jnp.transpose(w_ih),
                             precision=hp)                     # (F, 4H)
            b = jnp.dot(emb_b, jnp.transpose(w_ih), precision=hp) + b
        else:
            w_in_t = jnp.transpose(w_ih)                       # (H, 4H)
        inputs += [w_in_t, jnp.transpose(w_hh), b.reshape(1, 4 * H)]

    # Advisory cost hint for XLA scheduling around the custom call.
    flops = (2 * S * B * F * 4 * H                     # layer-0 input proj
             + 2 * S * B * H * 4 * H * (L - 1)         # deeper input projs
             + 2 * S * B * H * 4 * H * L)              # recurrent matmuls
    transcendentals = S * L * B * 5 * H                # 3 sigmoid + 2 tanh / step
    bytes_accessed = 4 * (sum(int(a.size) for a in inputs) + 2 * L * B * H)

    kernel = functools.partial(_encoder_kernel, n_layers=L, seq_len=S,
                               batch=B, hide=H)
    out = pl.pallas_call(
        kernel,
        out_shape=jax.ShapeDtypeStruct((2 * L, B, H), jnp.float32),
        cost_estimate=pl.CostEstimate(flops=int(flops),
                                      transcendentals=int(transcendentals),
                                      bytes_accessed=int(bytes_accessed)),
    )(*inputs)
    return out[:L], out[L:]


# ---------------- pure-JAX reference (for correctness check) ----------------

def encoder_reference(x, params):
    S, B, _ = x.shape
    hp = lax.Precision.HIGHEST
    emb = jnp.einsum("sbf,ef->sbe", x, params["emb_w"], precision=hp)
    emb = emb + params["emb_b"]
    cur = emb
    hs, cs = [], []
    for lp in params["layers"]:
        H = lp["w_hh"].shape[1]
        h = jnp.zeros((B, H), jnp.float32)
        c = jnp.zeros((B, H), jnp.float32)
        outs = []
        for t in range(S):
            g = (jnp.dot(cur[t], lp["w_ih"].T, precision=hp)
                 + jnp.dot(h, lp["w_hh"].T, precision=hp)
                 + lp["b_ih"] + lp["b_hh"])
            i = jax.nn.sigmoid(g[:, 0 * H:1 * H])
            f = jax.nn.sigmoid(g[:, 1 * H:2 * H])
            gg = jnp.tanh(g[:, 2 * H:3 * H])
            o = jax.nn.sigmoid(g[:, 3 * H:4 * H])
            c = f * c + i * gg
            h = o * jnp.tanh(c)
            outs.append(h)
        hs.append(h)
        cs.append(c)
        cur = jnp.stack(outs, axis=0)
    return jnp.stack(hs, axis=0), jnp.stack(cs, axis=0)


# ---------------- deterministic parameter initialization ----------------

def init_encoder(key, features, emb_dim, hide, n_layers):
    k_emb, k_rnn = jax.random.split(key)
    ks = jax.random.split(k_emb, 2)
    s = 1.0 / float(features) ** 0.5
    params = {
        "emb_w": jax.random.uniform(ks[0], (emb_dim, features), jnp.float32, -s, s),
        "emb_b": jax.random.uniform(ks[1], (emb_dim,), jnp.float32, -s, s),
        "layers": [],
    }
    sh = 1.0 / float(hide) ** 0.5
    lkeys = jax.random.split(k_rnn, n_layers)
    for l in range(n_layers):
        in_l = emb_dim if l == 0 else hide
        kk = jax.random.split(lkeys[l], 4)
        params["layers"].append({
            "w_ih": jax.random.uniform(kk[0], (4 * hide, in_l), jnp.float32, -sh, sh),
            "w_hh": jax.random.uniform(kk[1], (4 * hide, hide), jnp.float32, -sh, sh),
            "b_ih": jax.random.uniform(kk[2], (4 * hide,), jnp.float32, -sh, sh),
            "b_hh": jax.random.uniform(kk[3], (4 * hide,), jnp.float32, -sh, sh),
        })
    return params


if __name__ == "__main__":
    features, emb_dim, hide_size, n_layers = 4, 16, 32, 2
    # dropout = 0.25 in the PyTorch module -> eval-mode forward => identity
    seq_len, batch = 8, 8

    key = jax.random.PRNGKey(0)
    kx, kp = jax.random.split(key)
    x = jax.random.normal(kx, (seq_len, batch, features), jnp.float32)
    params = init_encoder(kp, features, emb_dim, hide_size, n_layers)

    hidden, cell = encoder_forward(x, params)
    hidden, cell = jax.block_until_ready((hidden, cell))
    assert hidden.shape == (n_layers, batch, hide_size), hidden.shape
    assert cell.shape == (n_layers, batch, hide_size), cell.shape

    h_ref, c_ref = encoder_reference(x, params)
    assert jnp.allclose(hidden, h_ref, rtol=5e-3, atol=5e-3)
    assert jnp.allclose(cell, c_ref, rtol=5e-3, atol=5e-3)
    print("KERNEL_OK")
</pallas_src>

<mosaic_0001>
module attributes {stable_mosaic.version = 11 : i64} {
  func.func @_encoder_kernel(%arg0: memref<64x4xf32, #tpu.memory_space<vmem>>, %arg1: memref<4x128xf32, #tpu.memory_space<vmem>>, %arg2: memref<32x128xf32, #tpu.memory_space<vmem>>, %arg3: memref<1x128xf32, #tpu.memory_space<vmem>>, %arg4: memref<32x128xf32, #tpu.memory_space<vmem>>, %arg5: memref<32x128xf32, #tpu.memory_space<vmem>>, %arg6: memref<1x128xf32, #tpu.memory_space<vmem>>, %arg7: memref<4x8x32xf32, #tpu.memory_space<vmem>>) attributes {dimension_semantics = [], scalar_prefetch = 0 : i64, scratch_operands = 0 : i64, tpu.core_type = #tpu.core_type<tc>} {
    %c0 = arith.constant 0 : index
    %c0_0 = arith.constant 0 : index
    %0 = vector.load %arg0[%c0, %c0_0] : memref<64x4xf32, #tpu.memory_space<vmem>>, vector<64x4xf32>
    %c0_1 = arith.constant 0 : index
    %c0_2 = arith.constant 0 : index
    %1 = vector.load %arg1[%c0_1, %c0_2] : memref<4x128xf32, #tpu.memory_space<vmem>>, vector<4x128xf32>
    %c0_3 = arith.constant 0 : index
    %c0_4 = arith.constant 0 : index
    %2 = vector.load %arg2[%c0_3, %c0_4] : memref<32x128xf32, #tpu.memory_space<vmem>>, vector<32x128xf32>
    %c0_5 = arith.constant 0 : index
    %c0_6 = arith.constant 0 : index
    %3 = vector.load %arg3[%c0_5, %c0_6] : memref<1x128xf32, #tpu.memory_space<vmem>>, vector<1x128xf32>
    %cst = arith.constant dense<0.000000e+00> : vector<64x128xf32>
    %4 = tpu.matmul %0, %1, %cst {dimension_numbers = #tpu.dot_dimension_numbers<[1], [0], [0], [1], [0, 0, 1, 1], [], []>} : vector<64x4xf32>, vector<4x128xf32>, vector<64x128xf32> -> vector<64x128xf32>
    %5 = vector.broadcast %3 : vector<1x128xf32> to vector<64x128xf32>
    %6 = arith.addf %4, %5 : vector<64x128xf32>
    %cst_7 = arith.constant 0.000000e+00 : f32
    %7 = vector.broadcast %cst_7 : f32 to vector<8x32xf32>
    %cst_8 = arith.constant 0.000000e+00 : f32
    %8 = vector.broadcast %cst_8 : f32 to vector<8x32xf32>
    %9 = vector.extract_strided_slice %6 {offsets = [0, 0], sizes = [8, 128], strides = [1, 1]} : vector<64x128xf32> to vector<8x128xf32>
    %cst_9 = arith.constant dense<0.000000e+00> : vector<8x128xf32>
    %10 = tpu.matmul %7, %2, %cst_9 {dimension_numbers = #tpu.dot_dimension_numbers<[1], [0], [0], [1], [0, 0, 1, 1], [], []>} : vector<8x32xf32>, vector<32x128xf32>, vector<8x128xf32> -> vector<8x128xf32>
    %11 = arith.addf %9, %10 : vector<8x128xf32>
    %12 = vector.extract_strided_slice %11 {offsets = [0, 0], sizes = [8, 96], strides = [1, 1]} : vector<8x128xf32> to vector<8x96xf32>
    %13 = arith.negf %12 : vector<8x96xf32>
    %14 = math.exp %13 : vector<8x96xf32>
    %cst_10 = arith.constant 1.000000e+00 : f32
    %15 = vector.broadcast %cst_10 : f32 to vector<8x96xf32>
    %16 = arith.addf %15, %14 : vector<8x96xf32>
    %17 = arith.divf %15, %16 : vector<8x96xf32>
    %18 = vector.extract_strided_slice %17 {offsets = [0, 0], sizes = [8, 32], strides = [1, 1]} : vector<8x96xf32> to vector<8x32xf32>
    %19 = vector.extract_strided_slice %17 {offsets = [0, 32], sizes = [8, 32], strides = [1, 1]} : vector<8x96xf32> to vector<8x32xf32>
    %20 = vector.extract_strided_slice %17 {offsets = [0, 64], sizes = [8, 32], strides = [1, 1]} : vector<8x96xf32> to vector<8x32xf32>
    %21 = vector.extract_strided_slice %11 {offsets = [0, 96], sizes = [8, 32], strides = [1, 1]} : vector<8x128xf32> to vector<8x32xf32>
    %22 = math.tanh %21 : vector<8x32xf32>
    %23 = arith.mulf %19, %8 : vector<8x32xf32>
    %24 = arith.mulf %18, %22 : vector<8x32xf32>
    %25 = arith.addf %23, %24 : vector<8x32xf32>
    %26 = math.tanh %25 : vector<8x32xf32>
    %27 = arith.mulf %20, %26 : vector<8x32xf32>
    %28 = vector.extract_strided_slice %6 {offsets = [8, 0], sizes = [8, 128], strides = [1, 1]} : vector<64x128xf32> to vector<8x128xf32>
    %cst_11 = arith.constant dense<0.000000e+00> : vector<8x128xf32>
    %29 = tpu.matmul %27, %2, %cst_11 {dimension_numbers = #tpu.dot_dimension_numbers<[1], [0], [0], [1], [0, 0, 1, 1], [], []>} : vector<8x32xf32>, vector<32x128xf32>, vector<8x128xf32> -> vector<8x128xf32>
    %30 = arith.addf %28, %29 : vector<8x128xf32>
    %31 = vector.extract_strided_slice %30 {offsets = [0, 0], sizes = [8, 96], strides = [1, 1]} : vector<8x128xf32> to vector<8x96xf32>
    %32 = arith.negf %31 : vector<8x96xf32>
    %33 = math.exp %32 : vector<8x96xf32>
    %cst_12 = arith.constant 1.000000e+00 : f32
    %34 = vector.broadcast %cst_12 : f32 to vector<8x96xf32>
    %35 = arith.addf %34, %33 : vector<8x96xf32>
    %36 = arith.divf %34, %35 : vector<8x96xf32>
    %37 = vector.extract_strided_slice %36 {offsets = [0, 0], sizes = [8, 32], strides = [1, 1]} : vector<8x96xf32> to vector<8x32xf32>
    %38 = vector.extract_strided_slice %36 {offsets = [0, 32], sizes = [8, 32], strides = [1, 1]} : vector<8x96xf32> to vector<8x32xf32>
    %39 = vector.extract_strided_slice %36 {offsets = [0, 64], sizes = [8, 32], strides = [1, 1]} : vector<8x96xf32> to vector<8x32xf32>
    %40 = vector.extract_strided_slice %30 {offsets = [0, 96], sizes = [8, 32], strides = [1, 1]} : vector<8x128xf32> to vector<8x32xf32>
    %41 = math.tanh %40 : vector<8x32xf32>
    %42 = arith.mulf %38, %25 : vector<8x32xf32>
    %43 = arith.mulf %37, %41 : vector<8x32xf32>
    %44 = arith.addf %42, %43 : vector<8x32xf32>
    %45 = math.tanh %44 : vector<8x32xf32>
    %46 = arith.mulf %39, %45 : vector<8x32xf32>
    %47 = vector.extract_strided_slice %6 {offsets = [16, 0], sizes = [8, 128], strides = [1, 1]} : vector<64x128xf32> to vector<8x128xf32>
    %cst_13 = arith.constant dense<0.000000e+00> : vector<8x128xf32>
    %48 = tpu.matmul %46, %2, %cst_13 {dimension_numbers = #tpu.dot_dimension_numbers<[1], [0], [0], [1], [0, 0, 1, 1], [], []>} : vector<8x32xf32>, vector<32x128xf32>, vector<8x128xf32> -> vector<8x128xf32>
    %49 = arith.addf %47, %48 : vector<8x128xf32>
    %50 = vector.extract_strided_slice %49 {offsets = [0, 0], sizes = [8, 96], strides = [1, 1]} : vector<8x128xf32> to vector<8x96xf32>
    %51 = arith.negf %50 : vector<8x96xf32>
    %52 = math.exp %51 : vector<8x96xf32>
    %cst_14 = arith.constant 1.000000e+00 : f32
    %53 = vector.broadcast %cst_14 : f32 to vector<8x96xf32>
    %54 = arith.addf %53, %52 : vector<8x96xf32>
    %55 = arith.divf %53, %54 : vector<8x96xf32>
    %56 = vector.extract_strided_slice %55 {offsets = [0, 0], sizes = [8, 32], strides = [1, 1]} : vector<8x96xf32> to vector<8x32xf32>
    %57 = vector.extract_strided_slice %55 {offsets = [0, 32], sizes = [8, 32], strides = [1, 1]} : vector<8x96xf32> to vector<8x32xf32>
    %58 = vector.extract_strided_slice %55 {offsets = [0, 64], sizes = [8, 32], strides = [1, 1]} : vector<8x96xf32> to vector<8x32xf32>
    %59 = vector.extract_strided_slice %49 {offsets = [0, 96], sizes = [8, 32], strides = [1, 1]} : vector<8x128xf32> to vector<8x32xf32>
    %60 = math.tanh %59 : vector<8x32xf32>
    %61 = arith.mulf %57, %44 : vector<8x32xf32>
    %62 = arith.mulf %56, %60 : vector<8x32xf32>
    %63 = arith.addf %61, %62 : vector<8x32xf32>
    %64 = math.tanh %63 : vector<8x32xf32>
    %65 = arith.mulf %58, %64 : vector<8x32xf32>
    %66 = vector.extract_strided_slice %6 {offsets = [24, 0], sizes = [8, 128], strides = [1, 1]} : vector<64x128xf32> to vector<8x128xf32>
    %cst_15 = arith.constant dense<0.000000e+00> : vector<8x128xf32>
    %67 = tpu.matmul %65, %2, %cst_15 {dimension_numbers = #tpu.dot_dimension_numbers<[1], [0], [0], [1], [0, 0, 1, 1], [], []>} : vector<8x32xf32>, vector<32x128xf32>, vector<8x128xf32> -> vector<8x128xf32>
    %68 = arith.addf %66, %67 : vector<8x128xf32>
    %69 = vector.extract_strided_slice %68 {offsets = [0, 0], sizes = [8, 96], strides = [1, 1]} : vector<8x128xf32> to vector<8x96xf32>
    %70 = arith.negf %69 : vector<8x96xf32>
    %71 = math.exp %70 : vector<8x96xf32>
    %cst_16 = arith.constant 1.000000e+00 : f32
    %72 = vector.broadcast %cst_16 : f32 to vector<8x96xf32>
    %73 = arith.addf %72, %71 : vector<8x96xf32>
    %74 = arith.divf %72, %73 : vector<8x96xf32>
    %75 = vector.extract_strided_slice %74 {offsets = [0, 0], sizes = [8, 32], strides = [1, 1]} : vector<8x96xf32> to vector<8x32xf32>
    %76 = vector.extract_strided_slice %74 {offsets = [0, 32], sizes = [8, 32], strides = [1, 1]} : vector<8x96xf32> to vector<8x32xf32>
    %77 = vector.extract_strided_slice %74 {offsets = [0, 64], sizes = [8, 32], strides = [1, 1]} : vector<8x96xf32> to vector<8x32xf32>
    %78 = vector.extract_strided_slice %68 {offsets = [0, 96], sizes = [8, 32], strides = [1, 1]} : vector<8x128xf32> to vector<8x32xf32>
    %79 = math.tanh %78 : vector<8x32xf32>
    %80 = arith.mulf %76, %63 : vector<8x32xf32>
    %81 = arith.mulf %75, %79 : vector<8x32xf32>
    %82 = arith.addf %80, %81 : vector<8x32xf32>
    %83 = math.tanh %82 : vector<8x32xf32>
    %84 = arith.mulf %77, %83 : vector<8x32xf32>
    %85 = vector.extract_strided_slice %6 {offsets = [32, 0], sizes = [8, 128], strides = [1, 1]} : vector<64x128xf32> to vector<8x128xf32>
    %cst_17 = arith.constant dense<0.000000e+00> : vector<8x128xf32>
    %86 = tpu.matmul %84, %2, %cst_17 {dimension_numbers = #tpu.dot_dimension_numbers<[1], [0], [0], [1], [0, 0, 1, 1], [], []>} : vector<8x32xf32>, vector<32x128xf32>, vector<8x128xf32> -> vector<8x128xf32>
    %87 = arith.addf %85, %86 : vector<8x128xf32>
    %88 = vector.extract_strided_slice %87 {offsets = [0, 0], sizes = [8, 96], strides = [1, 1]} : vector<8x128xf32> to vector<8x96xf32>
    %89 = arith.negf %88 : vector<8x96xf32>
    %90 = math.exp %89 : vector<8x96xf32>
    %cst_18 = arith.constant 1.000000e+00 : f32
    %91 = vector.broadcast %cst_18 : f32 to vector<8x96xf32>
    %92 = arith.addf %91, %90 : vector<8x96xf32>
    %93 = arith.divf %91, %92 : vector<8x96xf32>
    %94 = vector.extract_strided_slice %93 {offsets = [0, 0], sizes = [8, 32], strides = [1, 1]} : vector<8x96xf32> to vector<8x32xf32>
    %95 = vector.extract_strided_slice %93 {offsets = [0, 32], sizes = [8, 32], strides = [1, 1]} : vector<8x96xf32> to vector<8x32xf32>
    %96 = vector.extract_strided_slice %93 {offsets = [0, 64], sizes = [8, 32], strides = [1, 1]} : vector<8x96xf32> to vector<8x32xf32>
    %97 = vector.extract_strided_slice %87 {offsets = [0, 96], sizes = [8, 32], strides = [1, 1]} : vector<8x128xf32> to vector<8x32xf32>
    %98 = math.tanh %97 : vector<8x32xf32>
    %99 = arith.mulf %95, %82 : vector<8x32xf32>
    %100 = arith.mulf %94, %98 : vector<8x32xf32>
    %101 = arith.addf %99, %100 : vector<8x32xf32>
    %102 = math.tanh %101 : vector<8x32xf32>
    %103 = arith.mulf %96, %102 : vector<8x32xf32>
    %104 = vector.extract_strided_slice %6 {offsets = [40, 0], sizes = [8, 128], strides = [1, 1]} : vector<64x128xf32> to vector<8x128xf32>
    %cst_19 = arith.constant dense<0.000000e+00> : vector<8x128xf32>
    %105 = tpu.matmul %103, %2, %cst_19 {dimension_numbers = #tpu.dot_dimension_numbers<[1], [0], [0], [1], [0, 0, 1, 1], [], []>} : vector<8x32xf32>, vector<32x128xf32>, vector<8x128xf32> -> vector<8x128xf32>
    %106 = arith.addf %104, %105 : vector<8x128xf32>
    %107 = vector.extract_strided_slice %106 {offsets = [0, 0], sizes = [8, 96], strides = [1, 1]} : vector<8x128xf32> to vector<8x96xf32>
    %108 = arith.negf %107 : vector<8x96xf32>
    %109 = math.exp %108 : vector<8x96xf32>
    %cst_20 = arith.constant 1.000000e+00 : f32
    %110 = vector.broadcast %cst_20 : f32 to vector<8x96xf32>
    %111 = arith.addf %110, %109 : vector<8x96xf32>
    %112 = arith.divf %110, %111 : vector<8x96xf32>
    %113 = vector.extract_strided_slice %112 {offsets = [0, 0], sizes = [8, 32], strides = [1, 1]} : vector<8x96xf32> to vector<8x32xf32>
    %114 = vector.extract_strided_slice %112 {offsets = [0, 32], sizes = [8, 32], strides = [1, 1]} : vector<8x96xf32> to vector<8x32xf32>
    %115 = vector.extract_strided_slice %112 {offsets = [0, 64], sizes = [8, 32], strides = [1, 1]} : vector<8x96xf32> to vector<8x32xf32>
    %116 = vector.extract_strided_slice %106 {offsets = [0, 96], sizes = [8, 32], strides = [1, 1]} : vector<8x128xf32> to vector<8x32xf32>
    %117 = math.tanh %116 : vector<8x32xf32>
    %118 = arith.mulf %114, %101 : vector<8x32xf32>
    %119 = arith.mulf %113, %117 : vector<8x32xf32>
    %120 = arith.addf %118, %119 : vector<8x32xf32>
    %121 = math.tanh %120 : vector<8x32xf32>
    %122 = arith.mulf %115, %121 : vector<8x32xf32>
    %123 = vector.extract_strided_slice %6 {offsets = [48, 0], sizes = [8, 128], strides = [1, 1]} : vector<64x128xf32> to vector<8x128xf32>
    %cst_21 = arith.constant dense<0.000000e+00> : vector<8x128xf32>
    %124 = tpu.matmul %122, %2, %cst_21 {dimension_numbers = #tpu.dot_dimension_numbers<[1], [0], [0], [1], [0, 0, 1, 1], [], []>} : vector<8x32xf32>, vector<32x128xf32>, vector<8x128xf32> -> vector<8x128xf32>
    %125 = arith.addf %123, %124 : vector<8x128xf32>
    %126 = vector.extract_strided_slice %125 {offsets = [0, 0], sizes = [8, 96], strides = [1, 1]} : vector<8x128xf32> to vector<8x96xf32>
    %127 = arith.negf %126 : vector<8x96xf32>
    %128 = math.exp %127 : vector<8x96xf32>
    %cst_22 = arith.constant 1.000000e+00 : f32
    %129 = vector.broadcast %cst_22 : f32 to vector<8x96xf32>
    %130 = arith.addf %129, %128 : vector<8x96xf32>
    %131 = arith.divf %129, %130 : vector<8x96xf32>
    %132 = vector.extract_strided_slice %131 {offsets = [0, 0], sizes = [8, 32], strides = [1, 1]} : vector<8x96xf32> to vector<8x32xf32>
    %133 = vector.extract_strided_slice %131 {offsets = [0, 32], sizes = [8, 32], strides = [1, 1]} : vector<8x96xf32> to vector<8x32xf32>
    %134 = vector.extract_strided_slice %131 {offsets = [0, 64], sizes = [8, 32], strides = [1, 1]} : vector<8x96xf32> to vector<8x32xf32>
    %135 = vector.extract_strided_slice %125 {offsets = [0, 96], sizes = [8, 32], strides = [1, 1]} : vector<8x128xf32> to vector<8x32xf32>
    %136 = math.tanh %135 : vector<8x32xf32>
    %137 = arith.mulf %133, %120 : vector<8x32xf32>
    %138 = arith.mulf %132, %136 : vector<8x32xf32>
    %139 = arith.addf %137, %138 : vector<8x32xf32>
    %140 = math.tanh %139 : vector<8x32xf32>
    %141 = arith.mulf %134, %140 : vector<8x32xf32>
    %142 = vector.extract_strided_slice %6 {offsets = [56, 0], sizes = [8, 128], strides = [1, 1]} : vector<64x128xf32> to vector<8x128xf32>
    %cst_23 = arith.constant dense<0.000000e+00> : vector<8x128xf32>
    %143 = tpu.matmul %141, %2, %cst_23 {dimension_numbers = #tpu.dot_dimension_numbers<[1], [0], [0], [1], [0, 0, 1, 1], [], []>} : vector<8x32xf32>, vector<32x128xf32>, vector<8x128xf32> -> vector<8x128xf32>
    %144 = arith.addf %142, %143 : vector<8x128xf32>
    %145 = vector.extract_strided_slice %144 {offsets = [0, 0], sizes = [8, 96], strides = [1, 1]} : vector<8x128xf32> to vector<8x96xf32>
    %146 = arith.negf %145 : vector<8x96xf32>
    %147 = math.exp %146 : vector<8x96xf32>
    %cst_24 = arith.constant 1.000000e+00 : f32
    %148 = vector.broadcast %cst_24 : f32 to vector<8x96xf32>
    %149 = arith.addf %148, %147 : vector<8x96xf32>
    %150 = arith.divf %148, %149 : vector<8x96xf32>
    %151 = vector.extract_strided_slice %150 {offsets = [0, 0], sizes = [8, 32], strides = [1, 1]} : vector<8x96xf32> to vector<8x32xf32>
    %152 = vector.extract_strided_slice %150 {offsets = [0, 32], sizes = [8, 32], strides = [1, 1]} : vector<8x96xf32> to vector<8x32xf32>
    %153 = vector.extract_strided_slice %150 {offsets = [0, 64], sizes = [8, 32], strides = [1, 1]} : vector<8x96xf32> to vector<8x32xf32>
    %154 = vector.extract_strided_slice %144 {offsets = [0, 96], sizes = [8, 32], strides = [1, 1]} : vector<8x128xf32> to vector<8x32xf32>
    %155 = math.tanh %154 : vector<8x32xf32>
    %156 = arith.mulf %152, %139 : vector<8x32xf32>
    %157 = arith.mulf %151, %155 : vector<8x32xf32>
    %158 = arith.addf %156, %157 : vector<8x32xf32>
    %159 = math.tanh %158 : vector<8x32xf32>
    %160 = arith.mulf %153, %159 : vector<8x32xf32>
    %c0_25 = arith.constant 0 : index
    %c0_26 = arith.constant 0 : index
    %c0_27 = arith.constant 0 : index
    %161 = vector.load %arg7[%c0_25, %c0_26, %c0_27] : memref<4x8x32xf32, #tpu.memory_space<vmem>>, vector<1x8x32xf32>
    %162 = vector.shape_cast %161 : vector<1x8x32xf32> to vector<8x32xf32>
    %163 = vector.shape_cast %160 : vector<8x32xf32> to vector<1x8x32xf32>
    tpu.vector_store %arg7[%c0_25, %c0_26, %c0_27], %163 {strides = array<i32>} : memref<4x8x32xf32, #tpu.memory_space<vmem>>, vector<1x8x32xf32>,
    %c2 = arith.constant 2 : index
    %c0_28 = arith.constant 0 : index
    %c0_29 = arith.constant 0 : index
    %164 = vector.load %arg7[%c2, %c0_28, %c0_29] : memref<4x8x32xf32, #tpu.memory_space<vmem>>, vector<1x8x32xf32>
    %165 = vector.shape_cast %164 : vector<1x8x32xf32> to vector<8x32xf32>
    %166 = vector.shape_cast %158 : vector<8x32xf32> to vector<1x8x32xf32>
    tpu.vector_store %arg7[%c2, %c0_28, %c0_29], %166 {strides = array<i32>} : memref<4x8x32xf32, #tpu.memory_space<vmem>>, vector<1x8x32xf32>,
    %167 = tpu.concatenate %27, %46, %65, %84, %103, %122, %141, %160 in 0 : vector<8x32xf32>, vector<8x32xf32>, vector<8x32xf32>, vector<8x32xf32>, vector<8x32xf32>, vector<8x32xf32>, vector<8x32xf32>, vector<8x32xf32> -> vector<64x32xf32>
    %c0_30 = arith.constant 0 : index
    %c0_31 = arith.constant 0 : index
    %168 = vector.load %arg4[%c0_30, %c0_31] : memref<32x128xf32, #tpu.memory_space<vmem>>, vector<32x128xf32>
    %c0_32 = arith.constant 0 : index
    %c0_33 = arith.constant 0 : index
    %169 = vector.load %arg5[%c0_32, %c0_33] : memref<32x128xf32, #tpu.memory_space<vmem>>, vector<32x128xf32>
    %c0_34 = arith.constant 0 : index
    %c0_35 = arith.constant 0 : index
    %170 = vector.load %arg6[%c0_34, %c0_35] : memref<1x128xf32, #tpu.memory_space<vmem>>, vector<1x128xf32>
    %cst_36 = arith.constant dense<0.000000e+00> : vector<64x128xf32>
    %171 = tpu.matmul %167, %168, %cst_36 {dimension_numbers = #tpu.dot_dimension_numbers<[1], [0], [0], [1], [0, 0, 1, 1], [], []>} : vector<64x32xf32>, vector<32x128xf32>, vector<64x128xf32> -> vector<64x128xf32>
    %172 = vector.broadcast %170 : vector<1x128xf32> to vector<64x128xf32>
    %173 = arith.addf %171, %172 : vector<64x128xf32>
    %cst_37 = arith.constant 0.000000e+00 : f32
    %174 = vector.broadcast %cst_37 : f32 to vector<8x32xf32>
    %cst_38 = arith.constant 0.000000e+00 : f32
    %175 = vector.broadcast %cst_38 : f32 to vector<8x32xf32>
    %176 = vector.extract_strided_slice %173 {offsets = [0, 0], sizes = [8, 128], strides = [1, 1]} : vector<64x128xf32> to vector<8x128xf32>
    %cst_39 = arith.constant dense<0.000000e+00> : vector<8x128xf32>
    %177 = tpu.matmul %174, %169, %cst_39 {dimension_numbers = #tpu.dot_dimension_numbers<[1], [0], [0], [1], [0, 0, 1, 1], [], []>} : vector<8x32xf32>, vector<32x128xf32>, vector<8x128xf32> -> vector<8x128xf32>
    %178 = arith.addf %176, %177 : vector<8x128xf32>
    %179 = vector.extract_strided_slice %178 {offsets = [0, 0], sizes = [8, 96], strides = [1, 1]} : vector<8x128xf32> to vector<8x96xf32>
    %180 = arith.negf %179 : vector<8x96xf32>
    %181 = math.exp %180 : vector<8x96xf32>
    %cst_40 = arith.constant 1.000000e+00 : f32
    %182 = vector.broadcast %cst_40 : f32 to vector<8x96xf32>
    %183 = arith.addf %182, %181 : vector<8x96xf32>
    %184 = arith.divf %182, %183 : vector<8x96xf32>
    %185 = vector.extract_strided_slice %184 {offsets = [0, 0], sizes = [8, 32], strides = [1, 1]} : vector<8x96xf32> to vector<8x32xf32>
    %186 = vector.extract_strided_slice %184 {offsets = [0, 32], sizes = [8, 32], strides = [1, 1]} : vector<8x96xf32> to vector<8x32xf32>
    %187 = vector.extract_strided_slice %184 {offsets = [0, 64], sizes = [8, 32], strides = [1, 1]} : vector<8x96xf32> to vector<8x32xf32>
    %188 = vector.extract_strided_slice %178 {offsets = [0, 96], sizes = [8, 32], strides = [1, 1]} : vector<8x128xf32> to vector<8x32xf32>
    %189 = math.tanh %188 : vector<8x32xf32>
    %190 = arith.mulf %186, %175 : vector<8x32xf32>
    %191 = arith.mulf %185, %189 : vector<8x32xf32>
    %192 = arith.addf %190, %191 : vector<8x32xf32>
    %193 = math.tanh %192 : vector<8x32xf32>
    %194 = arith.mulf %187, %193 : vector<8x32xf32>
    %195 = vector.extract_strided_slice %173 {offsets = [8, 0], sizes = [8, 128], strides = [1, 1]} : vector<64x128xf32> to vector<8x128xf32>
    %cst_41 = arith.constant dense<0.000000e+00> : vector<8x128xf32>
    %196 = tpu.matmul %194, %169, %cst_41 {dimension_numbers = #tpu.dot_dimension_numbers<[1], [0], [0], [1], [0, 0, 1, 1], [], []>} : vector<8x32xf32>, vector<32x128xf32>, vector<8x128xf32> -> vector<8x128xf32>
    %197 = arith.addf %195, %196 : vector<8x128xf32>
    %198 = vector.extract_strided_slice %197 {offsets = [0, 0], sizes = [8, 96], strides = [1, 1]} : vector<8x128xf32> to vector<8x96xf32>
    %199 = arith.negf %198 : vector<8x96xf32>
    %200 = math.exp %199 : vector<8x96xf32>
    %cst_42 = arith.constant 1.000000e+00 : f32
    %201 = vector.broadcast %cst_42 : f32 to vector<8x96xf32>
    %202 = arith.addf %201, %200 : vector<8x96xf32>
    %203 = arith.divf %201, %202 : vector<8x96xf32>
    %204 = vector.extract_strided_slice %203 {offsets = [0, 0], sizes = [8, 32], strides = [1, 1]} : vector<8x96xf32> to vector<8x32xf32>
    %205 = vector.extract_strided_slice %203 {offsets = [0, 32], sizes = [8, 32], strides = [1, 1]} : vector<8x96xf32> to vector<8x32xf32>
    %206 = vector.extract_strided_slice %203 {offsets = [0, 64], sizes = [8, 32], strides = [1, 1]} : vector<8x96xf32> to vector<8x32xf32>
    %207 = vector.extract_strided_slice %197 {offsets = [0, 96], sizes = [8, 32], strides = [1, 1]} : vector<8x128xf32> to vector<8x32xf32>
    %208 = math.tanh %207 : vector<8x32xf32>
    %209 = arith.mulf %205, %192 : vector<8x32xf32>
    %210 = arith.mulf %204, %208 : vector<8x32xf32>
    %211 = arith.addf %209, %210 : vector<8x32xf32>
    %212 = math.tanh %211 : vector<8x32xf32>
    %213 = arith.mulf %206, %212 : vector<8x32xf32>
    %214 = vector.extract_strided_slice %173 {offsets = [16, 0], sizes = [8, 128], strides = [1, 1]} : vector<64x128xf32> to vector<8x128xf32>
    %cst_43 = arith.constant dense<0.000000e+00> : vector<8x128xf32>
    %215 = tpu.matmul %213, %169, %cst_43 {dimension_numbers = #tpu.dot_dimension_numbers<[1], [0], [0], [1], [0, 0, 1, 1], [], []>} : vector<8x32xf32>, vector<32x128xf32>, vector<8x128xf32> -> vector<8x128xf32>
    %216 = arith.addf %214, %215 : vector<8x128xf32>
    %217 = vector.extract_strided_slice %216 {offsets = [0, 0], sizes = [8, 96], strides = [1, 1]} : vector<8x128xf32> to vector<8x96xf32>
    %218 = arith.negf %217 : vector<8x96xf32>
    %219 = math.exp %218 : vector<8x96xf32>
    %cst_44 = arith.constant 1.000000e+00 : f32
    %220 = vector.broadcast %cst_44 : f32 to vector<8x96xf32>
    %221 = arith.addf %220, %219 : vector<8x96xf32>
    %222 = arith.divf %220, %221 : vector<8x96xf32>
    %223 = vector.extract_strided_slice %222 {offsets = [0, 0], sizes = [8, 32], strides = [1, 1]} : vector<8x96xf32> to vector<8x32xf32>
    %224 = vector.extract_strided_slice %222 {offsets = [0, 32], sizes = [8, 32], strides = [1, 1]} : vector<8x96xf32> to vector<8x32xf32>
    %225 = vector.extract_strided_slice %222 {offsets = [0, 64], sizes = [8, 32], strides = [1, 1]} : vector<8x96xf32> to vector<8x32xf32>
    %226 = vector.extract_strided_slice %216 {offsets = [0, 96], sizes = [8, 32], strides = [1, 1]} : vector<8x128xf32> to vector<8x32xf32>
    %227 = math.tanh %226 : vector<8x32xf32>
    %228 = arith.mulf %224, %211 : vector<8x32xf32>
    %229 = arith.mulf %223, %227 : vector<8x32xf32>
    %230 = arith.addf %228, %229 : vector<8x32xf32>
    %231 = math.tanh %230 : vector<8x32xf32>
    %232 = arith.mulf %225, %231 : vector<8x32xf32>
    %233 = vector.extract_strided_slice %173 {offsets = [24, 0], sizes = [8, 128], strides = [1, 1]} : vector<64x128xf32> to vector<8x128xf32>
    %cst_45 = arith.constant dense<0.000000e+00> : vector<8x128xf32>
    %234 = tpu.matmul %232, %169, %cst_45 {dimension_numbers = #tpu.dot_dimension_numbers<[1], [0], [0], [1], [0, 0, 1, 1], [], []>} : vector<8x32xf32>, vector<32x128xf32>, vector<8x128xf32> -> vector<8x128xf32>
    %235 = arith.addf %233, %234 : vector<8x128xf32>
    %236 = vector.extract_strided_slice %235 {offsets = [0, 0], sizes = [8, 96], strides = [1, 1]} : vector<8x128xf32> to vector<8x96xf32>
    %237 = arith.negf %236 : vector<8x96xf32>
    %238 = math.exp %237 : vector<8x96xf32>
    %cst_46 = arith.constant 1.000000e+00 : f32
    %239 = vector.broadcast %cst_46 : f32 to vector<8x96xf32>
    %240 = arith.addf %239, %238 : vector<8x96xf32>
    %241 = arith.divf %239, %240 : vector<8x96xf32>
    %242 = vector.extract_strided_slice %241 {offsets = [0, 0], sizes = [8, 32], strides = [1, 1]} : vector<8x96xf32> to vector<8x32xf32>
    %243 = vector.extract_strided_slice %241 {offsets = [0, 32], sizes = [8, 32], strides = [1, 1]} : vector<8x96xf32> to vector<8x32xf32>
    %244 = vector.extract_strided_slice %241 {offsets = [0, 64], sizes = [8, 32], strides = [1, 1]} : vector<8x96xf32> to vector<8x32xf32>
    %245 = vector.extract_strided_slice %235 {offsets = [0, 96], sizes = [8, 32], strides = [1, 1]} : vector<8x128xf32> to vector<8x32xf32>
    %246 = math.tanh %245 : vector<8x32xf32>
    %247 = arith.mulf %243, %230 : vector<8x32xf32>
    %248 = arith.mulf %242, %246 : vector<8x32xf32>
    %249 = arith.addf %247, %248 : vector<8x32xf32>
    %250 = math.tanh %249 : vector<8x32xf32>
    %251 = arith.mulf %244, %250 : vector<8x32xf32>
    %252 = vector.extract_strided_slice %173 {offsets = [32, 0], sizes = [8, 128], strides = [1, 1]} : vector<64x128xf32> to vector<8x128xf32>
    %cst_47 = arith.constant dense<0.000000e+00> : vector<8x128xf32>
    %253 = tpu.matmul %251, %169, %cst_47 {dimension_numbers = #tpu.dot_dimension_numbers<[1], [0], [0], [1], [0, 0, 1, 1], [], []>} : vector<8x32xf32>, vector<32x128xf32>, vector<8x128xf32> -> vector<8x128xf32>
    %254 = arith.addf %252, %253 : vector<8x128xf32>
    %255 = vector.extract_strided_slice %254 {offsets = [0, 0], sizes = [8, 96], strides = [1, 1]} : vector<8x128xf32> to vector<8x96xf32>
    %256 = arith.negf %255 : vector<8x96xf32>
    %257 = math.exp %256 : vector<8x96xf32>
    %cst_48 = arith.constant 1.000000e+00 : f32
    %258 = vector.broadcast %cst_48 : f32 to vector<8x96xf32>
    %259 = arith.addf %258, %257 : vector<8x96xf32>
    %260 = arith.divf %258, %259 : vector<8x96xf32>
    %261 = vector.extract_strided_slice %260 {offsets = [0, 0], sizes = [8, 32], strides = [1, 1]} : vector<8x96xf32> to vector<8x32xf32>
    %262 = vector.extract_strided_slice %260 {offsets = [0, 32], sizes = [8, 32], strides = [1, 1]} : vector<8x96xf32> to vector<8x32xf32>
    %263 = vector.extract_strided_slice %260 {offsets = [0, 64], sizes = [8, 32], strides = [1, 1]} : vector<8x96xf32> to vector<8x32xf32>
    %264 = vector.extract_strided_slice %254 {offsets = [0, 96], sizes = [8, 32], strides = [1, 1]} : vector<8x128xf32> to vector<8x32xf32>
    %265 = math.tanh %264 : vector<8x32xf32>
    %266 = arith.mulf %262, %249 : vector<8x32xf32>
    %267 = arith.mulf %261, %265 : vector<8x32xf32>
    %268 = arith.addf %266, %267 : vector<8x32xf32>
    %269 = math.tanh %268 : vector<8x32xf32>
    %270 = arith.mulf %263, %269 : vector<8x32xf32>
    %271 = vector.extract_strided_slice %173 {offsets = [40, 0], sizes = [8, 128], strides = [1, 1]} : vector<64x128xf32> to vector<8x128xf32>
    %cst_49 = arith.constant dense<0.000000e+00> : vector<8x128xf32>
    %272 = tpu.matmul %270, %169, %cst_49 {dimension_numbers = #tpu.dot_dimension_numbers<[1], [0], [0], [1], [0, 0, 1, 1], [], []>} : vector<8x32xf32>, vector<32x128xf32>, vector<8x128xf32> -> vector<8x128xf32>
    %273 = arith.addf %271, %272 : vector<8x128xf32>
    %274 = vector.extract_strided_slice %273 {offsets = [0, 0], sizes = [8, 96], strides = [1, 1]} : vector<8x128xf32> to vector<8x96xf32>
    %275 = arith.negf %274 : vector<8x96xf32>
    %276 = math.exp %275 : vector<8x96xf32>
    %cst_50 = arith.constant 1.000000e+00 : f32
    %277 = vector.broadcast %cst_50 : f32 to vector<8x96xf32>
    %278 = arith.addf %277, %276 : vector<8x96xf32>
    %279 = arith.divf %277, %278 : vector<8x96xf32>
    %280 = vector.extract_strided_slice %279 {offsets = [0, 0], sizes = [8, 32], strides = [1, 1]} : vector<8x96xf32> to vector<8x32xf32>
    %281 = vector.extract_strided_slice %279 {offsets = [0, 32], sizes = [8, 32], strides = [1, 1]} : vector<8x96xf32> to vector<8x32xf32>
    %282 = vector.extract_strided_slice %279 {offsets = [0, 64], sizes = [8, 32], strides = [1, 1]} : vector<8x96xf32> to vector<8x32xf32>
    %283 = vector.extract_strided_slice %273 {offsets = [0, 96], sizes = [8, 32], strides = [1, 1]} : vector<8x128xf32> to vector<8x32xf32>
    %284 = math.tanh %283 : vector<8x32xf32>
    %285 = arith.mulf %281, %268 : vector<8x32xf32>
    %286 = arith.mulf %280, %284 : vector<8x32xf32>
    %287 = arith.addf %285, %286 : vector<8x32xf32>
    %288 = math.tanh %287 : vector<8x32xf32>
    %289 = arith.mulf %282, %288 : vector<8x32xf32>
    %290 = vector.extract_strided_slice %173 {offsets = [48, 0], sizes = [8, 128], strides = [1, 1]} : vector<64x128xf32> to vector<8x128xf32>
    %cst_51 = arith.constant dense<0.000000e+00> : vector<8x128xf32>
    %291 = tpu.matmul %289, %169, %cst_51 {dimension_numbers = #tpu.dot_dimension_numbers<[1], [0], [0], [1], [0, 0, 1, 1], [], []>} : vector<8x32xf32>, vector<32x128xf32>, vector<8x128xf32> -> vector<8x128xf32>
    %292 = arith.addf %290, %291 : vector<8x128xf32>
    %293 = vector.extract_strided_slice %292 {offsets = [0, 0], sizes = [8, 96], strides = [1, 1]} : vector<8x128xf32> to vector<8x96xf32>
    %294 = arith.negf %293 : vector<8x96xf32>
    %295 = math.exp %294 : vector<8x96xf32>
    %cst_52 = arith.constant 1.000000e+00 : f32
    %296 = vector.broadcast %cst_52 : f32 to vector<8x96xf32>
    %297 = arith.addf %296, %295 : vector<8x96xf32>
    %298 = arith.divf %296, %297 : vector<8x96xf32>
    %299 = vector.extract_strided_slice %298 {offsets = [0, 0], sizes = [8, 32], strides = [1, 1]} : vector<8x96xf32> to vector<8x32xf32>
    %300 = vector.extract_strided_slice %298 {offsets = [0, 32], sizes = [8, 32], strides = [1, 1]} : vector<8x96xf32> to vector<8x32xf32>
    %301 = vector.extract_strided_slice %298 {offsets = [0, 64], sizes = [8, 32], strides = [1, 1]} : vector<8x96xf32> to vector<8x32xf32>
    %302 = vector.extract_strided_slice %292 {offsets = [0, 96], sizes = [8, 32], strides = [1, 1]} : vector<8x128xf32> to vector<8x32xf32>
    %303 = math.tanh %302 : vector<8x32xf32>
    %304 = arith.mulf %300, %287 : vector<8x32xf32>
    %305 = arith.mulf %299, %303 : vector<8x32xf32>
    %306 = arith.addf %304, %305 : vector<8x32xf32>
    %307 = math.tanh %306 : vector<8x32xf32>
    %308 = arith.mulf %301, %307 : vector<8x32xf32>
    %309 = vector.extract_strided_slice %173 {offsets = [56, 0], sizes = [8, 128], strides = [1, 1]} : vector<64x128xf32> to vector<8x128xf32>
    %cst_53 = arith.constant dense<0.000000e+00> : vector<8x128xf32>
    %310 = tpu.matmul %308, %169, %cst_53 {dimension_numbers = #tpu.dot_dimension_numbers<[1], [0], [0], [1], [0, 0, 1, 1], [], []>} : vector<8x32xf32>, vector<32x128xf32>, vector<8x128xf32> -> vector<8x128xf32>
    %311 = arith.addf %309, %310 : vector<8x128xf32>
    %312 = vector.extract_strided_slice %311 {offsets = [0, 0], sizes = [8, 96], strides = [1, 1]} : vector<8x128xf32> to vector<8x96xf32>
    %313 = arith.negf %312 : vector<8x96xf32>
    %314 = math.exp %313 : vector<8x96xf32>
    %cst_54 = arith.constant 1.000000e+00 : f32
    %315 = vector.broadcast %cst_54 : f32 to vector<8x96xf32>
    %316 = arith.addf %315, %314 : vector<8x96xf32>
    %317 = arith.divf %315, %316 : vector<8x96xf32>
    %318 = vector.extract_strided_slice %317 {offsets = [0, 0], sizes = [8, 32], strides = [1, 1]} : vector<8x96xf32> to vector<8x32xf32>
    %319 = vector.extract_strided_slice %317 {offsets = [0, 32], sizes = [8, 32], strides = [1, 1]} : vector<8x96xf32> to vector<8x32xf32>
    %320 = vector.extract_strided_slice %317 {offsets = [0, 64], sizes = [8, 32], strides = [1, 1]} : vector<8x96xf32> to vector<8x32xf32>
    %321 = vector.extract_strided_slice %311 {offsets = [0, 96], sizes = [8, 32], strides = [1, 1]} : vector<8x128xf32> to vector<8x32xf32>
    %322 = math.tanh %321 : vector<8x32xf32>
    %323 = arith.mulf %319, %306 : vector<8x32xf32>
    %324 = arith.mulf %318, %322 : vector<8x32xf32>
    %325 = arith.addf %323, %324 : vector<8x32xf32>
    %326 = math.tanh %325 : vector<8x32xf32>
    %327 = arith.mulf %320, %326 : vector<8x32xf32>
    %c1 = arith.constant 1 : index
    %c0_55 = arith.constant 0 : index
    %c0_56 = arith.constant 0 : index
    %328 = vector.load %arg7[%c1, %c0_55, %c0_56] : memref<4x8x32xf32, #tpu.memory_space<vmem>>, vector<1x8x32xf32>
    %329 = vector.shape_cast %328 : vector<1x8x32xf32> to vector<8x32xf32>
    %330 = vector.shape_cast %327 : vector<8x32xf32> to vector<1x8x32xf32>
    tpu.vector_store %arg7[%c1, %c0_55, %c0_56], %330 {strides = array<i32>} : memref<4x8x32xf32, #tpu.memory_space<vmem>>, vector<1x8x32xf32>,
    %c3 = arith.constant 3 : index
    %c0_57 = arith.constant 0 : index
    %c0_58 = arith.constant 0 : index
    %331 = vector.load %arg7[%c3, %c0_57, %c0_58] : memref<4x8x32xf32, #tpu.memory_space<vmem>>, vector<1x8x32xf32>
    %332 = vector.shape_cast %331 : vector<1x8x32xf32> to vector<8x32xf32>
    %333 = vector.shape_cast %325 : vector<8x32xf32> to vector<1x8x32xf32>
    tpu.vector_store %arg7[%c3, %c0_57, %c0_58], %333 {strides = array<i32>} : memref<4x8x32xf32, #tpu.memory_space<vmem>>, vector<1x8x32xf32>,
    return
  }
}

</mosaic_0001>

<llo_original>
// kernel: tpu_custom_call.1
$region0: #{tpu_custom_call.1}
  #allocation0 [shape = 'u32[]', space=smem, size = 0x4, offset = 0x4, fixed_abs, tag = 'smem constant byte address 0x4 - core index']
  #allocation1 [shape = 'u32[144,128]{1,0:T(1,128)}', space=vmem, size = 0x12000, scoped, tag = 'internal scratch']
  %s0 = inlined_call_operand.vmem [shape: f32[64,4], index: 0, kind: input, shape index: {}]
  %s1 = inlined_call_operand.vmem [shape: f32[4,128], index: 1, kind: input, shape index: {}]
  %s2 = inlined_call_operand.vmem [shape: f32[32,128], index: 2, kind: input, shape index: {}]
  %s3 = inlined_call_operand.vmem [shape: f32[1,128], index: 3, kind: input, shape index: {}]
  %s4 = inlined_call_operand.vmem [shape: f32[32,128], index: 4, kind: input, shape index: {}]
  %s5 = inlined_call_operand.hbm [shape: f32[32,128], index: 5, kind: input, shape index: {}]
  %s6 = inlined_call_operand.vmem [shape: f32[1,128], index: 6, kind: input, shape index: {}]
  %s7 = inlined_call_operand.hbm [shape: f32[4,8,32], index: 7, kind: output, shape index: {}]
  %s8 = sld [smem:[#allocation0]]
  $region42: #{tpu_custom_call.1} parent=0
    _
  %s10 = ssub.s32 1, %s8
  %s11 = scalar_select 0, %s10, %s8
  $region1: #{tpu_custom_call.1} parent=0
    #allocation2 [shape = 'u8[16384]{0}', space=vmem, size = 0x4000, scoped, tag = 'input window, operand 5, single buffered']
    #allocation3 [shape = 's32[1]{0}', space=sflag, size = 0x4, scoped, tag = 'scoped memory for tpu_custom_call.1']
    #allocation4 [shape = 's32[1]{0}', space=sflag, size = 0x4, scoped, tag = 'scoped memory for tpu_custom_call.1']
    #allocation5 [shape = 'u8[16384]{0}', space=vmem, size = 0x4000, scoped, tag = 'output window, operand 0, single buffered']
    %12 = vsyncpa [#allocation3], 0
    %13 = vsyncpa [#allocation4], 0
    // Predicated region
    $region2: #{tpu_custom_call.1} parent=1 // pred_check
      _
    $region3: #{tpu_custom_call.1} parent=1 // pred_check_branch
      %15 = sbr.rel (0) target = $region5
    $region4: #{tpu_custom_call.1} parent=1 // pred_region
      _
    $region5: #{tpu_custom_call.1} parent=1 // pred_fallthru
      _
    // Predicated region
    $region6: #{tpu_custom_call.1} parent=1 // pred_check
      _
    $region7: #{tpu_custom_call.1} parent=1 // pred_check_branch
      %17 = sbr.rel (0) target = $region9
    $region8: #{tpu_custom_call.1} parent=1 // pred_region
      _
    $region9: #{tpu_custom_call.1} parent=1 // pred_fallthru
      _
    // Predicated region
    $region10: #{tpu_custom_call.1} parent=1 // pred_check
      _
    $region11: #{tpu_custom_call.1} parent=1 // pred_check_branch
      %19 = sbr.rel (0) target = $region13
    $region12: #{tpu_custom_call.1} parent=1 // pred_region
      _
    $region13: #{tpu_custom_call.1} parent=1 // pred_fallthru
      _
    // Predicated region
    $region14: #{tpu_custom_call.1} parent=1 // pred_check
      _
    $region15: #{tpu_custom_call.1} parent=1 // pred_check_branch
      %21 = sbr.rel (0) target = $region17
    $region16: #{tpu_custom_call.1} parent=1 // pred_region
      _
    $region17: #{tpu_custom_call.1} parent=1 // pred_fallthru
      _
    // Predicated region
    $region18: #{tpu_custom_call.1} parent=1 // pred_check
      _
    $region19: #{tpu_custom_call.1} parent=1 // pred_check_branch
      %23 = sbr.rel (0) target = $region21
    $region20: #{tpu_custom_call.1} parent=1 // pred_region
      _
    $region21: #{tpu_custom_call.1} parent=1 // pred_fallthru
      _
    // Predicated region
    $region22: #{tpu_custom_call.1} parent=1 // pred_check
      _
    $region23: #{tpu_custom_call.1} parent=1 // pred_check_branch
      %25 = sbr.rel (0) target = $region25
    $region24: #{tpu_custom_call.1} parent=1 // pred_region
      %s27 = ssub.s32 512, 512
      %28 = vsyncadd [#allocation3], %s27
      %s29 = sshll.u32 [#allocation2], 4
      %s30 = int_to_ptr.vmem [resolvable:$true] %s29
      %35 = dma.hbm_to_vmem [thread:$0]  %s5, 512, %s30, [#allocation3], 128, 128, 8
    $region25: #{tpu_custom_call.1} parent=1 // pred_fallthru
      _
    // Predicated region
    $region26: #{tpu_custom_call.1} parent=1 // pred_check
      _
    $region27: #{tpu_custom_call.1} parent=1 // pred_check_branch
      %37 = sbr.rel (0) target = $region29
    $region28: #{tpu_custom_call.1} parent=1 // pred_region
      _
    $region29: #{tpu_custom_call.1} parent=1 // pred_fallthru
      _
    // Predicated region
    $region30: #{tpu_custom_call.1} parent=1 // pred_check
      _
    $region31: #{tpu_custom_call.1} parent=1 // pred_check_branch
      %39 = sbr.rel (0) target = $region33
    $region32: #{tpu_custom_call.1} parent=1 // pred_region
      %40 = dma.done [#allocation3], 512
    $region33: #{tpu_custom_call.1} parent=1 // pred_fallthru
      _
    %v41 = vld [vmem:[%s0] sm:$0xff]
    %v42 = vld [vmem:[%s0 + $0x8] sm:$0xff]
    %v43 = vld [vmem:[%s0 + $0x10] sm:$0xff]
    %v44 = vld [vmem:[%s0 + $0x18] sm:$0xff]
    %v45 = vld [vmem:[%s0 + $0x20] sm:$0xff]
    %v46 = vld [vmem:[%s0 + $0x28] sm:$0xff]
    %v47 = vld [vmem:[%s0 + $0x30] sm:$0xff]
    %v48 = vld [vmem:[%s0 + $0x38] sm:$0xff]
    %v49 = vld [vmem:[%s1] sm:$0xf]
    %v50 = vld [vmem:[%s2] sm:$0xff]
    %v51 = vld [vmem:[%s2 + $0x8] sm:$0xff]
    %v52 = vld [vmem:[%s2 + $0x10] sm:$0xff]
    %v53 = vld [vmem:[%s2 + $0x18] sm:$0xff]
    %v54 = vld [vmem:[%s3] sm:$0x1]
    %v56 = vlaneseq
    %v57 = vshrl.u32 %v56, 7
    %v58 = vsub.s32 0, %v57
    %v59 = vrot.slane %v54, %v58
    %vm61 = vcmask 31744
    %v63 = vsel %vm61, %v41, 0
    %v66 = vsel %vm61, %v42, 0
    %v69 = vsel %vm61, %v43, 0
    %v72 = vsel %vm61, %v44, 0
    %v75 = vsel %vm61, %v45, 0
    %v78 = vsel %vm61, %v46, 0
    %v81 = vsel %vm61, %v47, 0
    %v84 = vsel %vm61, %v48, 0
    %vm86 = vcmask 1043456
    %v88 = vsel %vm86, %v49, 0
    %90 = vmatprep.subr.mxu0 0.0
    %91 = vmatpush1.msra.mxu0 0.0
    %92 = vmatprep.subr.mxu0 0.0
    %93 = vmatpush1.msra.mxu0 0.0
    %94 = vmatprep.subr.mxu0 0.0
    %95 = vmatpush1.msra.mxu0 0.0
    %96 = vmatprep.subr.mxu0 0.0
    %97 = vmatpush1.msra.mxu0 0.0
    %98 = vmatprep.subr.mxu0 0.0
    %99 = vmatpush1.msra.mxu0 0.0
    %100 = vmatprep.subr.mxu0 0.0
    %101 = vmatpush1.msra.mxu0 0.0
    %102 = vmatprep.subr.mxu0 0.0
    %103 = vmatpush1.msra.mxu0 0.0
    %104 = vmatprep.subr.mxu0 0.0
    %105 = vmatpush1.msra.mxu0 0.0
    %106 = vmatprep.subr.mxu0 0.0
    %107 = vmatpush1.msra.mxu0 0.0
    %108 = vmatprep.subr.mxu0 0.0
    %109 = vmatpush1.msra.mxu0 0.0
    %110 = vmatprep.subr.mxu0 0.0
    %111 = vmatpush1.msra.mxu0 0.0
    %112 = vmatprep.subr.mxu0 0.0
    %113 = vmatpush1.msra.mxu0 0.0
    %114 = vmatprep.subr.mxu0 0.0
    %115 = vmatpush1.msra.mxu0 0.0
    %116 = vmatprep.subr.mxu0 0.0
    %117 = vmatpush1.msra.mxu0 0.0
    %118 = vmatprep.subr.mxu0 0.0
    %119 = vmatpush1.msra.mxu0 0.0
    %120 = vmatprep.subr.mxu0 0.0
    %121 = vmatpush1.msra.mxu0 %v88
    %122 = vmatprep.subr.mxu0 0.0
    %123 = vmatpush2.msra.mxu0 0.0
    %124 = vmatprep.subr.mxu0 0.0
    %125 = vmatpush2.msra.mxu0 0.0
    %126 = vmatprep.subr.mxu0 0.0
    %127 = vmatpush2.msra.mxu0 0.0
    %128 = vmatprep.subr.mxu0 0.0
    %129 = vmatpush2.msra.mxu0 0.0
    %130 = vmatprep.subr.mxu0 0.0
    %131 = vmatpush2.msra.mxu0 0.0
    %132 = vmatprep.subr.mxu0 0.0
    %133 = vmatpush2.msra.mxu0 0.0
    %134 = vmatprep.subr.mxu0 0.0
    %135 = vmatpush2.msra.mxu0 0.0
    %136 = vmatprep.subr.mxu0 0.0
    %137 = vmatpush2.msra.mxu0 0.0
    %138 = vmatprep.subr.mxu0 0.0
    %139 = vmatpush2.msra.mxu0 0.0
    %140 = vmatprep.subr.mxu0 0.0
    %141 = vmatpush2.msra.mxu0 0.0
    %142 = vmatprep.subr.mxu0 0.0
    %143 = vmatpush2.msra.mxu0 0.0
    %144 = vmatprep.subr.mxu0 0.0
    %145 = vmatpush2.msra.mxu0 0.0
    %146 = vmatprep.subr.mxu0 0.0
    %147 = vmatpush2.msra.mxu0 0.0
    %148 = vmatprep.subr.mxu0 0.0
    %149 = vmatpush2.msra.mxu0 0.0
    %150 = vmatprep.subr.mxu0 0.0
    %151 = vmatpush2.msra.mxu0 0.0
    %152 = vmatprep.subr.mxu0 0.0
    %153 = vmatpush2.msra.mxu0 0.0
    %154 = vmatprep.mubr.f32.mxu0 0.0
    %155 = vmatmul.mubr.f32.gmra.mxu0 %v63
    %v156 = vpop.f32.mrf.mxu0
    %v157 = vadd.f32 %v59, %v156
    %v158 = vpop.f32.mrf.mxu0
    %159 = vmatprep.mubr.f32.mxu0 0.0
    %160 = vmatmul.mubr.f32.gmra.mxu0 %v66
    %v161 = vpop.f32.mrf.mxu0
    %v162 = vadd.f32 %v59, %v161
    %v163 = vpop.f32.mrf.mxu0
    %164 = vmatprep.mubr.f32.mxu0 0.0
    %165 = vmatmul.mubr.f32.gmra.mxu0 %v69
    %v166 = vpop.f32.mrf.mxu0
    %v167 = vadd.f32 %v59, %v166
    %v168 = vpop.f32.mrf.mxu0
    %169 = vmatprep.mubr.f32.mxu0 0.0
    %170 = vmatmul.mubr.f32.gmra.mxu0 %v72
    %v171 = vpop.f32.mrf.mxu0
    %v172 = vadd.f32 %v59, %v171
    %v173 = vpop.f32.mrf.mxu0
    %174 = vmatprep.mubr.f32.mxu0 0.0
    %175 = vmatmul.mubr.f32.gmra.mxu0 %v75
    %v176 = vpop.f32.mrf.mxu0
    %v177 = vadd.f32 %v59, %v176
    %v178 = vpop.f32.mrf.mxu0
    %179 = vmatprep.mubr.f32.mxu0 0.0
    %180 = vmatmul.mubr.f32.gmra.mxu0 %v78
    %v181 = vpop.f32.mrf.mxu0
    %v182 = vadd.f32 %v59, %v181
    %v183 = vpop.f32.mrf.mxu0
    %184 = vmatprep.mubr.f32.mxu0 0.0
    %185 = vmatmul.mubr.f32.gmra.mxu0 %v81
    %v186 = vpop.f32.mrf.mxu0
    %v187 = vadd.f32 %v59, %v186
    %v188 = vpop.f32.mrf.mxu0
    %189 = vmatprep.mubr.f32.mxu0 0.0
    %190 = vmatmul.mubr.f32.gmra.mxu0 %v84
    %v191 = vpop.f32.mrf.mxu0
    %v192 = vadd.f32 %v59, %v191
    %v193 = vpop.f32.mrf.mxu0
    %194 = vdwg.mxu0
    %vm195 = vcmask 261120
    %v197 = vsel %vm195, 0.0, 0
    %199 = vmatprep.subr.mxu0 0.0
    %200 = vmatpush1.msra.mxu0 0.0
    %201 = vmatprep.subr.mxu0 0.0
    %202 = vmatpush1.msra.mxu0 0.0
    %203 = vmatprep.subr.mxu0 0.0
    %204 = vmatpush1.msra.mxu0 0.0
    %205 = vmatprep.subr.mxu0 0.0
    %206 = vmatpush1.msra.mxu0 0.0
    %207 = vmatprep.subr.mxu0 0.0
    %208 = vmatpush1.msra.mxu0 0.0
    %209 = vmatprep.subr.mxu0 0.0
    %210 = vmatpush1.msra.mxu0 0.0
    %211 = vmatprep.subr.mxu0 0.0
    %212 = vmatpush1.msra.mxu0 0.0
    %213 = vmatprep.subr.mxu0 0.0
    %214 = vmatpush1.msra.mxu0 0.0
    %215 = vmatprep.subr.mxu0 0.0
    %216 = vmatpush1.msra.mxu0 0.0
    %217 = vmatprep.subr.mxu0 0.0
    %218 = vmatpush1.msra.mxu0 0.0
    %219 = vmatprep.subr.mxu0 0.0
    %220 = vmatpush1.msra.mxu0 0.0
    %221 = vmatprep.subr.mxu0 0.0
    %222 = vmatpush1.msra.mxu0 0.0
    %223 = vmatprep.subr.mxu0 0.0
    %224 = vmatpush1.msra.mxu0 %v53
    %225 = vmatprep.subr.mxu0 0.0
    %226 = vmatpush1.msra.mxu0 %v52
    %227 = vmatprep.subr.mxu0 0.0
    %228 = vmatpush1.msra.mxu0 %v51
    %229 = vmatprep.subr.mxu0 0.0
    %230 = vmatpush1.msra.mxu0 %v50
    %231 = vmatprep.subr.mxu0 0.0
    %232 = vmatpush2.msra.mxu0 0.0
    %233 = vmatprep.subr.mxu0 0.0
    %234 = vmatpush2.msra.mxu0 0.0
    %235 = vmatprep.subr.mxu0 0.0
    %236 = vmatpush2.msra.mxu0 0.0
    %237 = vmatprep.subr.mxu0 0.0
    %238 = vmatpush2.msra.mxu0 0.0
    %239 = vmatprep.subr.mxu0 0.0
    %240 = vmatpush2.msra.mxu0 0.0
    %241 = vmatprep.subr.mxu0 0.0
    %242 = vmatpush2.msra.mxu0 0.0
    %243 = vmatprep.subr.mxu0 0.0
    %244 = vmatpush2.msra.mxu0 0.0
    %245 = vmatprep.subr.mxu0 0.0
    %246 = vmatpush2.msra.mxu0 0.0
    %247 = vmatprep.subr.mxu0 0.0
    %248 = vmatpush2.msra.mxu0 0.0
    %249 = vmatprep.subr.mxu0 0.0
    %250 = vmatpush2.msra.mxu0 0.0
    %251 = vmatprep.subr.mxu0 0.0
    %252 = vmatpush2.msra.mxu0 0.0
    %253 = vmatprep.subr.mxu0 0.0
    %254 = vmatpush2.msra.mxu0 0.0
    %255 = vmatprep.subr.mxu0 0.0
    %256 = vmatpush2.msra.mxu0 0.0
    %257 = vmatprep.subr.mxu0 0.0
    %258 = vmatpush2.msra.mxu0 0.0
    %259 = vmatprep.subr.mxu0 0.0
    %260 = vmatpush2.msra.mxu0 0.0
    %261 = vmatprep.subr.mxu0 0.0
    %262 = vmatpush2.msra.mxu0 0.0
    %263 = vmatprep.mubr.f32.mxu0 0.0
    %264 = vmatmul.mubr.f32.gmra.mxu0 %v197
    %v265 = vpop.f32.mrf.mxu0
    %v266 = vadd.f32 0.0, %v265
    %v267 = vpop.f32.mrf.mxu0
    %268 = vdwg.mxu0
    %v269 = vadd.f32 %v157, %v266
    %v270 = vxor.u32 %v269, 2147483648
    %v271 = vmul.f32 %v270, 1.442695
    %v272 = vpow.pop %v271
    %v273 = vadd.f32 %v272, 1.0
    %v274 = vrcp.pop %v273
    %v275 = vmul.f32 1.0, %v274
    %v276 = vtanh.pop %v269
    %v277 = vmul.f32 %v275, 0.0
    %279 = vrot.lane.b32.xlu0 %v276, 32
    %v280 = vpop.permute.xlu0 %279
    %v282 = vmul.f32 %v275, %v280
    %284 = vrot.lane.b32.xlu0 %v282, 32
    %v285 = vpop.permute.xlu0 %284
    %v287 = vadd.f32 %v277, %v285
    %v288 = vtanh.pop %v287
    %290 = vrot.lane.b32.xlu0 %v288, 32
    %v291 = vpop.permute.xlu0 %290
    %v293 = vmul.f32 %v275, %v291
    %295 = vrot.lane.b32.xlu0 %v293, 64
    %v296 = vpop.permute.xlu0 %295
    %v297 = vsel %vm195, %v296, 0
    %299 = vmatprep.subr.mxu0 0.0
    %300 = vmatpush1.msra.mxu0 0.0
    %301 = vmatprep.subr.mxu0 0.0
    %302 = vmatpush1.msra.mxu0 0.0
    %303 = vmatprep.subr.mxu0 0.0
    %304 = vmatpush1.msra.mxu0 0.0
    %305 = vmatprep.subr.mxu0 0.0
    %306 = vmatpush1.msra.mxu0 0.0
    %307 = vmatprep.subr.mxu0 0.0
    %308 = vmatpush1.msra.mxu0 0.0
    %309 = vmatprep.subr.mxu0 0.0
    %310 = vmatpush1.msra.mxu0 0.0
    %311 = vmatprep.subr.mxu0 0.0
    %312 = vmatpush1.msra.mxu0 0.0
    %313 = vmatprep.subr.mxu0 0.0
    %314 = vmatpush1.msra.mxu0 0.0
    %315 = vmatprep.subr.mxu0 0.0
    %316 = vmatpush1.msra.mxu0 0.0
    %317 = vmatprep.subr.mxu0 0.0
    %318 = vmatpush1.msra.mxu0 0.0
    %319 = vmatprep.subr.mxu0 0.0
    %320 = vmatpush1.msra.mxu0 0.0
    %321 = vmatprep.subr.mxu0 0.0
    %322 = vmatpush1.msra.mxu0 0.0
    %323 = vmatprep.subr.mxu0 0.0
    %324 = vmatpush1.msra.mxu0 %v53
    %325 = vmatprep.subr.mxu0 0.0
    %326 = vmatpush1.msra.mxu0 %v52
    %327 = vmatprep.subr.mxu0 0.0
    %328 = vmatpush1.msra.mxu0 %v51
    %329 = vmatprep.subr.mxu0 0.0
    %330 = vmatpush1.msra.mxu0 %v50
    %331 = vmatprep.subr.mxu0 0.0
    %332 = vmatpush2.msra.mxu0 0.0
    %333 = vmatprep.subr.mxu0 0.0
    %334 = vmatpush2.msra.mxu0 0.0
    %335 = vmatprep.subr.mxu0 0.0
    %336 = vmatpush2.msra.mxu0 0.0
    %337 = vmatprep.subr.mxu0 0.0
    %338 = vmatpush2.msra.mxu0 0.0
    %339 = vmatprep.subr.mxu0 0.0
    %340 = vmatpush2.msra.mxu0 0.0
    %341 = vmatprep.subr.mxu0 0.0
    %342 = vmatpush2.msra.mxu0 0.0
    %343 = vmatprep.subr.mxu0 0.0
    %344 = vmatpush2.msra.mxu0 0.0
    %345 = vmatprep.subr.mxu0 0.0
    %346 = vmatpush2.msra.mxu0 0.0
    %347 = vmatprep.subr.mxu0 0.0
    %348 = vmatpush2.msra.mxu0 0.0
    %349 = vmatprep.subr.mxu0 0.0
    %350 = vmatpush2.msra.mxu0 0.0
    %351 = vmatprep.subr.mxu0 0.0
    %352 = vmatpush2.msra.mxu0 0.0
    %353 = vmatprep.subr.mxu0 0.0
    %354 = vmatpush2.msra.mxu0 0.0
    %355 = vmatprep.subr.mxu0 0.0
    %356 = vmatpush2.msra.mxu0 0.0
    %357 = vmatprep.subr.mxu0 0.0
    %358 = vmatpush2.msra.mxu0 0.0
    %359 = vmatprep.subr.mxu0 0.0
    %360 = vmatpush2.msra.mxu0 0.0
    %361 = vmatprep.subr.mxu0 0.0
    %362 = vmatpush2.msra.mxu0 0.0
    %363 = vmatprep.mubr.f32.mxu0 0.0
    %364 = vmatmul.mubr.f32.gmra.mxu0 %v297
    %v365 = vpop.f32.mrf.mxu0
    %v366 = vadd.f32 0.0, %v365
    %v367 = vpop.f32.mrf.mxu0
    %368 = vdwg.mxu0
    %v369 = vadd.f32 %v162, %v366
    %v370 = vxor.u32 %v369, 2147483648
    %v371 = vmul.f32 %v370, 1.442695
    %v372 = vpow.pop %v371
    %v373 = vadd.f32 %v372, 1.0
    %v374 = vrcp.pop %v373
    %v375 = vmul.f32 1.0, %v374
    %v376 = vtanh.pop %v369
    %v377 = vmul.f32 %v375, %v287
    %379 = vrot.lane.b32.xlu0 %v376, 32
    %v380 = vpop.permute.xlu0 %379
    %v382 = vmul.f32 %v375, %v380
    %384 = vrot.lane.b32.xlu0 %v382, 32
    %v385 = vpop.permute.xlu0 %384
    %v387 = vadd.f32 %v377, %v385
    %v388 = vtanh.pop %v387
    %390 = vrot.lane.b32.xlu0 %v388, 32
    %v391 = vpop.permute.xlu0 %390
    %v393 = vmul.f32 %v375, %v391
    %395 = vrot.lane.b32.xlu0 %v393, 64
    %v396 = vpop.permute.xlu0 %395
    %v397 = vsel %vm195, %v396, 0
    %399 = vmatprep.subr.mxu0 0.0
    %400 = vmatpush1.msra.mxu0 0.0
    %401 = vmatprep.subr.mxu0 0.0
    %402 = vmatpush1.msra.mxu0 0.0
    %403 = vmatprep.subr.mxu0 0.0
    %404 = vmatpush1.msra.mxu0 0.0
    %405 = vmatprep.subr.mxu0 0.0
    %406 = vmatpush1.msra.mxu0 0.0
    %407 = vmatprep.subr.mxu0 0.0
    %408 = vmatpush1.msra.mxu0 0.0
    %409 = vmatprep.subr.mxu0 0.0
    %410 = vmatpush1.msra.mxu0 0.0
    %411 = vmatprep.subr.mxu0 0.0
    %412 = vmatpush1.msra.mxu0 0.0
    %413 = vmatprep.subr.mxu0 0.0
    %414 = vmatpush1.msra.mxu0 0.0
    %415 = vmatprep.subr.mxu0 0.0
    %416 = vmatpush1.msra.mxu0 0.0
    %417 = vmatprep.subr.mxu0 0.0
    %418 = vmatpush1.msra.mxu0 0.0
    %419 = vmatprep.subr.mxu0 0.0
    %420 = vmatpush1.msra.mxu0 0.0
    %421 = vmatprep.subr.mxu0 0.0
    %422 = vmatpush1.msra.mxu0 0.0
    %423 = vmatprep.subr.mxu0 0.0
    %424 = vmatpush1.msra.mxu0 %v53
    %425 = vmatprep.subr.mxu0 0.0
    %426 = vmatpush1.msra.mxu0 %v52
    %427 = vmatprep.subr.mxu0 0.0
    %428 = vmatpush1.msra.mxu0 %v51
    %429 = vmatprep.subr.mxu0 0.0
    %430 = vmatpush1.msra.mxu0 %v50
    %431 = vmatprep.subr.mxu0 0.0
    %432 = vmatpush2.msra.mxu0 0.0
    %433 = vmatprep.subr.mxu0 0.0
    %434 = vmatpush2.msra.mxu0 0.0
    %435 = vmatprep.subr.mxu0 0.0
    %436 = vmatpush2.msra.mxu0 0.0
    %437 = vmatprep.subr.mxu0 0.0
    %438 = vmatpush2.msra.mxu0 0.0
    %439 = vmatprep.subr.mxu0 0.0
    %440 = vmatpush2.msra.mxu0 0.0
    %441 = vmatprep.subr.mxu0 0.0
    %442 = vmatpush2.msra.mxu0 0.0
    %443 = vmatprep.subr.mxu0 0.0
    %444 = vmatpush2.msra.mxu0 0.0
    %445 = vmatprep.subr.mxu0 0.0
    %446 = vmatpush2.msra.mxu0 0.0
    %447 = vmatprep.subr.mxu0 0.0
    %448 = vmatpush2.msra.mxu0 0.0
    %449 = vmatprep.subr.mxu0 0.0
    %450 = vmatpush2.msra.mxu0 0.0
    %451 = vmatprep.subr.mxu0 0.0
    %452 = vmatpush2.msra.mxu0 0.0
    %453 = vmatprep.subr.mxu0 0.0
    %454 = vmatpush2.msra.mxu0 0.0
    %455 = vmatprep.subr.mxu0 0.0
    %456 = vmatpush2.msra.mxu0 0.0
    %457 = vmatprep.subr.mxu0 0.0
    %458 = vmatpush2.msra.mxu0 0.0
    %459 = vmatprep.subr.mxu0 0.0
    %460 = vmatpush2.msra.mxu0 0.0
    %461 = vmatprep.subr.mxu0 0.0
    %462 = vmatpush2.msra.mxu0 0.0
    %463 = vmatprep.mubr.f32.mxu0 0.0
    %464 = vmatmul.mubr.f32.gmra.mxu0 %v397
    %v465 = vpop.f32.mrf.mxu0
    %v466 = vadd.f32 0.0, %v465
    %v467 = vpop.f32.mrf.mxu0
    %468 = vdwg.mxu0
    %v469 = vadd.f32 %v167, %v466
    %v470 = vxor.u32 %v469, 2147483648
    %v471 = vmul.f32 %v470, 1.442695
    %v472 = vpow.pop %v471
    %v473 = vadd.f32 %v472, 1.0
    %v474 = vrcp.pop %v473
    %v475 = vmul.f32 1.0, %v474
    %v476 = vtanh.pop %v469
    %v477 = vmul.f32 %v475, %v387
    %479 = vrot.lane.b32.xlu0 %v476, 32
    %v480 = vpop.permute.xlu0 %479
    %v482 = vmul.f32 %v475, %v480
    %484 = vrot.lane.b32.xlu0 %v482, 32
    %v485 = vpop.permute.xlu0 %484
    %v487 = vadd.f32 %v477, %v485
    %v488 = vtanh.pop %v487
    %490 = vrot.lane.b32.xlu0 %v488, 32
    %v491 = vpop.permute.xlu0 %490
    %v493 = vmul.f32 %v475, %v491
    %495 = vrot.lane.b32.xlu0 %v493, 64
    %v496 = vpop.permute.xlu0 %495
    %v497 = vsel %vm195, %v496, 0
    %499 = vmatprep.subr.mxu0 0.0
    %500 = vmatpush1.msra.mxu0 0.0
    %501 = vmatprep.subr.mxu0 0.0
    %502 = vmatpush1.msra.mxu0 0.0
    %503 = vmatprep.subr.mxu0 0.0
    %504 = vmatpush1.msra.mxu0 0.0
    %505 = vmatprep.subr.mxu0 0.0
    %506 = vmatpush1.msra.mxu0 0.0
    %507 = vmatprep.subr.mxu0 0.0
    %508 = vmatpush1.msra.mxu0 0.0
    %509 = vmatprep.subr.mxu0 0.0
    %510 = vmatpush1.msra.mxu0 0.0
    %511 = vmatprep.subr.mxu0 0.0
    %512 = vmatpush1.msra.mxu0 0.0
    %513 = vmatprep.subr.mxu0 0.0
    %514 = vmatpush1.msra.mxu0 0.0
    %515 = vmatprep.subr.mxu0 0.0
    %516 = vmatpush1.msra.mxu0 0.0
    %517 = vmatprep.subr.mxu0 0.0
    %518 = vmatpush1.msra.mxu0 0.0
    %519 = vmatprep.subr.mxu0 0.0
    %520 = vmatpush1.msra.mxu0 0.0
    %521 = vmatprep.subr.mxu0 0.0
    %522 = vmatpush1.msra.mxu0 0.0
    %523 = vmatprep.subr.mxu0 0.0
    %524 = vmatpush1.msra.mxu0 %v53
    %525 = vmatprep.subr.mxu0 0.0
    %526 = vmatpush1.msra.mxu0 %v52
    %527 = vmatprep.subr.mxu0 0.0
    %528 = vmatpush1.msra.mxu0 %v51
    %529 = vmatprep.subr.mxu0 0.0
    %530 = vmatpush1.msra.mxu0 %v50
    %531 = vmatprep.subr.mxu0 0.0
    %532 = vmatpush2.msra.mxu0 0.0
    %533 = vmatprep.subr.mxu0 0.0
    %534 = vmatpush2.msra.mxu0 0.0
    %535 = vmatprep.subr.mxu0 0.0
    %536 = vmatpush2.msra.mxu0 0.0
    %537 = vmatprep.subr.mxu0 0.0
    %538 = vmatpush2.msra.mxu0 0.0
    %539 = vmatprep.subr.mxu0 0.0
    %540 = vmatpush2.msra.mxu0 0.0
    %541 = vmatprep.subr.mxu0 0.0
    %542 = vmatpush2.msra.mxu0 0.0
    %543 = vmatprep.subr.mxu0 0.0
    %544 = vmatpush2.msra.mxu0 0.0
    %545 = vmatprep.subr.mxu0 0.0
    %546 = vmatpush2.msra.mxu0 0.0
    %547 = vmatprep.subr.mxu0 0.0
    %548 = vmatpush2.msra.mxu0 0.0
    %549 = vmatprep.subr.mxu0 0.0
    %550 = vmatpush2.msra.mxu0 0.0
    %551 = vmatprep.subr.mxu0 0.0
    %552 = vmatpush2.msra.mxu0 0.0
    %553 = vmatprep.subr.mxu0 0.0
    %554 = vmatpush2.msra.mxu0 0.0
    %555 = vmatprep.subr.mxu0 0.0
    %556 = vmatpush2.msra.mxu0 0.0
    %557 = vmatprep.subr.mxu0 0.0
    %558 = vmatpush2.msra.mxu0 0.0
    %559 = vmatprep.subr.mxu0 0.0
    %560 = vmatpush2.msra.mxu0 0.0
    %561 = vmatprep.subr.mxu0 0.0
    %562 = vmatpush2.msra.mxu0 0.0
    %563 = vmatprep.mubr.f32.mxu0 0.0
    %564 = vmatmul.mubr.f32.gmra.mxu0 %v497
    %v565 = vpop.f32.mrf.mxu0
    %v566 = vadd.f32 0.0, %v565
    %v567 = vpop.f32.mrf.mxu0
    %568 = vdwg.mxu0
    %v569 = vadd.f32 %v172, %v566
    %v570 = vxor.u32 %v569, 2147483648
    %v571 = vmul.f32 %v570, 1.442695
    %v572 = vpow.pop %v571
    %v573 = vadd.f32 %v572, 1.0
    %v574 = vrcp.pop %v573
    %v575 = vmul.f32 1.0, %v574
    %v576 = vtanh.pop %v569
    %v577 = vmul.f32 %v575, %v487
    %579 = vrot.lane.b32.xlu0 %v576, 32
    %v580 = vpop.permute.xlu0 %579
    %v582 = vmul.f32 %v575, %v580
    %584 = vrot.lane.b32.xlu0 %v582, 32
    %v585 = vpop.permute.xlu0 %584
    %v587 = vadd.f32 %v577, %v585
    %v588 = vtanh.pop %v587
    %590 = vrot.lane.b32.xlu0 %v588, 32
    %v591 = vpop.permute.xlu0 %590
    %v593 = vmul.f32 %v575, %v591
    %595 = vrot.lane.b32.xlu0 %v593, 64
    %v596 = vpop.permute.xlu0 %595
    %v597 = vsel %vm195, %v596, 0
    %599 = vmatprep.subr.mxu0 0.0
    %600 = vmatpush1.msra.mxu0 0.0
    %601 = vmatprep.subr.mxu0 0.0
    %602 = vmatpush1.msra.mxu0 0.0
    %603 = vmatprep.subr.mxu0 0.0
    %604 = vmatpush1.msra.mxu0 0.0
    %605 = vmatprep.subr.mxu0 0.0
    %606 = vmatpush1.msra.mxu0 0.0
    %607 = vmatprep.subr.mxu0 0.0
    %608 = vmatpush1.msra.mxu0 0.0
    %609 = vmatprep.subr.mxu0 0.0
    %610 = vmatpush1.msra.mxu0 0.0
    %611 = vmatprep.subr.mxu0 0.0
    %612 = vmatpush1.msra.mxu0 0.0
    %613 = vmatprep.subr.mxu0 0.0
    %614 = vmatpush1.msra.mxu0 0.0
    %615 = vmatprep.subr.mxu0 0.0
    %616 = vmatpush1.msra.mxu0 0.0
    %617 = vmatprep.subr.mxu0 0.0
    %618 = vmatpush1.msra.mxu0 0.0
    %619 = vmatprep.subr.mxu0 0.0
    %620 = vmatpush1.msra.mxu0 0.0
    %621 = vmatprep.subr.mxu0 0.0
    %622 = vmatpush1.msra.mxu0 0.0
    %623 = vmatprep.subr.mxu0 0.0
    %624 = vmatpush1.msra.mxu0 %v53
    %625 = vmatprep.subr.mxu0 0.0
    %626 = vmatpush1.msra.mxu0 %v52
    %627 = vmatprep.subr.mxu0 0.0
    %628 = vmatpush1.msra.mxu0 %v51
    %629 = vmatprep.subr.mxu0 0.0
    %630 = vmatpush1.msra.mxu0 %v50
    %631 = vmatprep.subr.mxu0 0.0
    %632 = vmatpush2.msra.mxu0 0.0
    %633 = vmatprep.subr.mxu0 0.0
    %634 = vmatpush2.msra.mxu0 0.0
    %635 = vmatprep.subr.mxu0 0.0
    %636 = vmatpush2.msra.mxu0 0.0
    %637 = vmatprep.subr.mxu0 0.0
    %638 = vmatpush2.msra.mxu0 0.0
    %639 = vmatprep.subr.mxu0 0.0
    %640 = vmatpush2.msra.mxu0 0.0
    %641 = vmatprep.subr.mxu0 0.0
    %642 = vmatpush2.msra.mxu0 0.0
    %643 = vmatprep.subr.mxu0 0.0
    %644 = vmatpush2.msra.mxu0 0.0
    %645 = vmatprep.subr.mxu0 0.0
    %646 = vmatpush2.msra.mxu0 0.0
    %647 = vmatprep.subr.mxu0 0.0
    %648 = vmatpush2.msra.mxu0 0.0
    %649 = vmatprep.subr.mxu0 0.0
    %650 = vmatpush2.msra.mxu0 0.0
    %651 = vmatprep.subr.mxu0 0.0
    %652 = vmatpush2.msra.mxu0 0.0
    %653 = vmatprep.subr.mxu0 0.0
    %654 = vmatpush2.msra.mxu0 0.0
    %655 = vmatprep.subr.mxu0 0.0
    %656 = vmatpush2.msra.mxu0 0.0
    %657 = vmatprep.subr.mxu0 0.0
    %658 = vmatpush2.msra.mxu0 0.0
    %659 = vmatprep.subr.mxu0 0.0
    %660 = vmatpush2.msra.mxu0 0.0
    %661 = vmatprep.subr.mxu0 0.0
    %662 = vmatpush2.msra.mxu0 0.0
    %663 = vmatprep.mubr.f32.mxu0 0.0
    %664 = vmatmul.mubr.f32.gmra.mxu0 %v597
    %v665 = vpop.f32.mrf.mxu0
    %v666 = vadd.f32 0.0, %v665
    %v667 = vpop.f32.mrf.mxu0
    %668 = vdwg.mxu0
    %v669 = vadd.f32 %v177, %v666
    %v670 = vxor.u32 %v669, 2147483648
    %v671 = vmul.f32 %v670, 1.442695
    %v672 = vpow.pop %v671
    %v673 = vadd.f32 %v672, 1.0
    %v674 = vrcp.pop %v673
    %v675 = vmul.f32 1.0, %v674
    %v676 = vtanh.pop %v669
    %v677 = vmul.f32 %v675, %v587
    %679 = vrot.lane.b32.xlu0 %v676, 32
    %v680 = vpop.permute.xlu0 %679
    %v682 = vmul.f32 %v675, %v680
    %684 = vrot.lane.b32.xlu0 %v682, 32
    %v685 = vpop.permute.xlu0 %684
    %v687 = vadd.f32 %v677, %v685
    %v688 = vtanh.pop %v687
    %690 = vrot.lane.b32.xlu0 %v688, 32
    %v691 = vpop.permute.xlu0 %690
    %v693 = vmul.f32 %v675, %v691
    %695 = vrot.lane.b32.xlu0 %v693, 64
    %v696 = vpop.permute.xlu0 %695
    %v697 = vsel %vm195, %v696, 0
    %699 = vmatprep.subr.mxu0 0.0
    %700 = vmatpush1.msra.mxu0 0.0
    %701 = vmatprep.subr.mxu0 0.0
    %702 = vmatpush1.msra.mxu0 0.0
    %703 = vmatprep.subr.mxu0 0.0
    %704 = vmatpush1.msra.mxu0 0.0
    %705 = vmatprep.subr.mxu0 0.0
    %706 = vmatpush1.msra.mxu0 0.0
    %707 = vmatprep.subr.mxu0 0.0
    %708 = vmatpush1.msra.mxu0 0.0
    %709 = vmatprep.subr.mxu0 0.0
    %710 = vmatpush1.msra.mxu0 0.0
    %711 = vmatprep.subr.mxu0 0.0
    %712 = vmatpush1.msra.mxu0 0.0
    %713 = vmatprep.subr.mxu0 0.0
    %714 = vmatpush1.msra.mxu0 0.0
    %715 = vmatprep.subr.mxu0 0.0
    %716 = vmatpush1.msra.mxu0 0.0
    %717 = vmatprep.subr.mxu0 0.0
    %718 = vmatpush1.msra.mxu0 0.0
    %719 = vmatprep.subr.mxu0 0.0
    %720 = vmatpush1.msra.mxu0 0.0
    %721 = vmatprep.subr.mxu0 0.0
    %722 = vmatpush1.msra.mxu0 0.0
    %723 = vmatprep.subr.mxu0 0.0
    %724 = vmatpush1.msra.mxu0 %v53
    %725 = vmatprep.subr.mxu0 0.0
    %726 = vmatpush1.msra.mxu0 %v52
    %727 = vmatprep.subr.mxu0 0.0
    %728 = vmatpush1.msra.mxu0 %v51
    %729 = vmatprep.subr.mxu0 0.0
    %730 = vmatpush1.msra.mxu0 %v50
    %731 = vmatprep.subr.mxu0 0.0
    %732 = vmatpush2.msra.mxu0 0.0
    %733 = vmatprep.subr.mxu0 0.0
    %734 = vmatpush2.msra.mxu0 0.0
    %735 = vmatprep.subr.mxu0 0.0
    %736 = vmatpush2.msra.mxu0 0.0
    %737 = vmatprep.subr.mxu0 0.0
    %738 = vmatpush2.msra.mxu0 0.0
    %739 = vmatprep.subr.mxu0 0.0
    %740 = vmatpush2.msra.mxu0 0.0
    %741 = vmatprep.subr.mxu0 0.0
    %742 = vmatpush2.msra.mxu0 0.0
    %743 = vmatprep.subr.mxu0 0.0
    %744 = vmatpush2.msra.mxu0 0.0
    %745 = vmatprep.subr.mxu0 0.0
    %746 = vmatpush2.msra.mxu0 0.0
    %747 = vmatprep.subr.mxu0 0.0
    %748 = vmatpush2.msra.mxu0 0.0
    %749 = vmatprep.subr.mxu0 0.0
    %750 = vmatpush2.msra.mxu0 0.0
    %751 = vmatprep.subr.mxu0 0.0
    %752 = vmatpush2.msra.mxu0 0.0
    %753 = vmatprep.subr.mxu0 0.0
    %754 = vmatpush2.msra.mxu0 0.0
    %755 = vmatprep.subr.mxu0 0.0
    %756 = vmatpush2.msra.mxu0 0.0
    %757 = vmatprep.subr.mxu0 0.0
    %758 = vmatpush2.msra.mxu0 0.0
    %759 = vmatprep.subr.mxu0 0.0
    %760 = vmatpush2.msra.mxu0 0.0
    %761 = vmatprep.subr.mxu0 0.0
    %762 = vmatpush2.msra.mxu0 0.0
    %763 = vmatprep.mubr.f32.mxu0 0.0
    %764 = vmatmul.mubr.f32.gmra.mxu0 %v697
    %v765 = vpop.f32.mrf.mxu0
    %v766 = vadd.f32 0.0, %v765
    %v767 = vpop.f32.mrf.mxu0
    %768 = vdwg.mxu0
    %v769 = vadd.f32 %v182, %v766
    %v770 = vxor.u32 %v769, 2147483648
    %v771 = vmul.f32 %v770, 1.442695
    %v772 = vpow.pop %v771
    %v773 = vadd.f32 %v772, 1.0
    %v774 = vrcp.pop %v773
    %v775 = vmul.f32 1.0, %v774
    %v776 = vtanh.pop %v769
    %v777 = vmul.f32 %v775, %v687
    %779 = vrot.lane.b32.xlu0 %v776, 32
    %v780 = vpop.permute.xlu0 %779
    %v782 = vmul.f32 %v775, %v780
    %784 = vrot.lane.b32.xlu0 %v782, 32
    %v785 = vpop.permute.xlu0 %784
    %v787 = vadd.f32 %v777, %v785
    %v788 = vtanh.pop %v787
    %790 = vrot.lane.b32.xlu0 %v788, 32
    %v791 = vpop.permute.xlu0 %790
    %v793 = vmul.f32 %v775, %v791
    %795 = vrot.lane.b32.xlu0 %v793, 64
    %v796 = vpop.permute.xlu0 %795
    %v797 = vsel %vm195, %v796, 0
    %799 = vmatprep.subr.mxu0 0.0
    %800 = vmatpush1.msra.mxu0 0.0
    %801 = vmatprep.subr.mxu0 0.0
    %802 = vmatpush1.msra.mxu0 0.0
    %803 = vmatprep.subr.mxu0 0.0
    %804 = vmatpush1.msra.mxu0 0.0
    %805 = vmatprep.subr.mxu0 0.0
    %806 = vmatpush1.msra.mxu0 0.0
    %807 = vmatprep.subr.mxu0 0.0
    %808 = vmatpush1.msra.mxu0 0.0
    %809 = vmatprep.subr.mxu0 0.0
    %810 = vmatpush1.msra.mxu0 0.0
    %811 = vmatprep.subr.mxu0 0.0
    %812 = vmatpush1.msra.mxu0 0.0
    %813 = vmatprep.subr.mxu0 0.0
    %814 = vmatpush1.msra.mxu0 0.0
    %815 = vmatprep.subr.mxu0 0.0
    %816 = vmatpush1.msra.mxu0 0.0
    %817 = vmatprep.subr.mxu0 0.0
    %818 = vmatpush1.msra.mxu0 0.0
    %819 = vmatprep.subr.mxu0 0.0
    %820 = vmatpush1.msra.mxu0 0.0
    %821 = vmatprep.subr.mxu0 0.0
    %822 = vmatpush1.msra.mxu0 0.0
    %823 = vmatprep.subr.mxu0 0.0
    %824 = vmatpush1.msra.mxu0 %v53
    %825 = vmatprep.subr.mxu0 0.0
    %826 = vmatpush1.msra.mxu0 %v52
    %827 = vmatprep.subr.mxu0 0.0
    %828 = vmatpush1.msra.mxu0 %v51
    %829 = vmatprep.subr.mxu0 0.0
    %830 = vmatpush1.msra.mxu0 %v50
    %831 = vmatprep.subr.mxu0 0.0
    %832 = vmatpush2.msra.mxu0 0.0
    %833 = vmatprep.subr.mxu0 0.0
    %834 = vmatpush2.msra.mxu0 0.0
    %835 = vmatprep.subr.mxu0 0.0
    %836 = vmatpush2.msra.mxu0 0.0
    %837 = vmatprep.subr.mxu0 0.0
    %838 = vmatpush2.msra.mxu0 0.0
    %839 = vmatprep.subr.mxu0 0.0
    %840 = vmatpush2.msra.mxu0 0.0
    %841 = vmatprep.subr.mxu0 0.0
    %842 = vmatpush2.msra.mxu0 0.0
    %843 = vmatprep.subr.mxu0 0.0
    %844 = vmatpush2.msra.mxu0 0.0
    %845 = vmatprep.subr.mxu0 0.0
    %846 = vmatpush2.msra.mxu0 0.0
    %847 = vmatprep.subr.mxu0 0.0
    %848 = vmatpush2.msra.mxu0 0.0
    %849 = vmatprep.subr.mxu0 0.0
    %850 = vmatpush2.msra.mxu0 0.0
    %851 = vmatprep.subr.mxu0 0.0
    %852 = vmatpush2.msra.mxu0 0.0
    %853 = vmatprep.subr.mxu0 0.0
    %854 = vmatpush2.msra.mxu0 0.0
    %855 = vmatprep.subr.mxu0 0.0
    %856 = vmatpush2.msra.mxu0 0.0
    %857 = vmatprep.subr.mxu0 0.0
    %858 = vmatpush2.msra.mxu0 0.0
    %859 = vmatprep.subr.mxu0 0.0
    %860 = vmatpush2.msra.mxu0 0.0
    %861 = vmatprep.subr.mxu0 0.0
    %862 = vmatpush2.msra.mxu0 0.0
    %863 = vmatprep.mubr.f32.mxu0 0.0
    %864 = vmatmul.mubr.f32.gmra.mxu0 %v797
    %v865 = vpop.f32.mrf.mxu0
    %v866 = vadd.f32 0.0, %v865
    %v867 = vpop.f32.mrf.mxu0
    %868 = vdwg.mxu0
    %v869 = vadd.f32 %v187, %v866
    %v870 = vxor.u32 %v869, 2147483648
    %v871 = vmul.f32 %v870, 1.442695
    %v872 = vpow.pop %v871
    %v873 = vadd.f32 %v872, 1.0
    %v874 = vrcp.pop %v873
    %v875 = vmul.f32 1.0, %v874
    %v876 = vtanh.pop %v869
    %v877 = vmul.f32 %v875, %v787
    %879 = vrot.lane.b32.xlu0 %v876, 32
    %v880 = vpop.permute.xlu0 %879
    %v882 = vmul.f32 %v875, %v880
    %884 = vrot.lane.b32.xlu0 %v882, 32
    %v885 = vpop.permute.xlu0 %884
    %v887 = vadd.f32 %v877, %v885
    %v888 = vtanh.pop %v887
    %890 = vrot.lane.b32.xlu0 %v888, 32
    %v891 = vpop.permute.xlu0 %890
    %v893 = vmul.f32 %v875, %v891
    %895 = vrot.lane.b32.xlu0 %v893, 64
    %v896 = vpop.permute.xlu0 %895
    %v897 = vsel %vm195, %v896, 0
    %899 = vmatprep.subr.mxu0 0.0
    %900 = vmatpush1.msra.mxu0 0.0
    %901 = vmatprep.subr.mxu0 0.0
    %902 = vmatpush1.msra.mxu0 0.0
    %903 = vmatprep.subr.mxu0 0.0
    %904 = vmatpush1.msra.mxu0 0.0
    %905 = vmatprep.subr.mxu0 0.0
    %906 = vmatpush1.msra.mxu0 0.0
    %907 = vmatprep.subr.mxu0 0.0
    %908 = vmatpush1.msra.mxu0 0.0
    %909 = vmatprep.subr.mxu0 0.0
    %910 = vmatpush1.msra.mxu0 0.0
    %911 = vmatprep.subr.mxu0 0.0
    %912 = vmatpush1.msra.mxu0 0.0
    %913 = vmatprep.subr.mxu0 0.0
    %914 = vmatpush1.msra.mxu0 0.0
    %915 = vmatprep.subr.mxu0 0.0
    %916 = vmatpush1.msra.mxu0 0.0
    %917 = vmatprep.subr.mxu0 0.0
    %918 = vmatpush1.msra.mxu0 0.0
    %919 = vmatprep.subr.mxu0 0.0
    %920 = vmatpush1.msra.mxu0 0.0
    %921 = vmatprep.subr.mxu0 0.0
    %922 = vmatpush1.msra.mxu0 0.0
    %923 = vmatprep.subr.mxu0 0.0
    %924 = vmatpush1.msra.mxu0 %v53
    %925 = vmatprep.subr.mxu0 0.0
    %926 = vmatpush1.msra.mxu0 %v52
    %927 = vmatprep.subr.mxu0 0.0
    %928 = vmatpush1.msra.mxu0 %v51
    %929 = vmatprep.subr.mxu0 0.0
    %930 = vmatpush1.msra.mxu0 %v50
    %931 = vmatprep.subr.mxu0 0.0
    %932 = vmatpush2.msra.mxu0 0.0
    %933 = vmatprep.subr.mxu0 0.0
    %934 = vmatpush2.msra.mxu0 0.0
    %935 = vmatprep.subr.mxu0 0.0
    %936 = vmatpush2.msra.mxu0 0.0
    %937 = vmatprep.subr.mxu0 0.0
    %938 = vmatpush2.msra.mxu0 0.0
    %939 = vmatprep.subr.mxu0 0.0
    %940 = vmatpush2.msra.mxu0 0.0
    %941 = vmatprep.subr.mxu0 0.0
    %942 = vmatpush2.msra.mxu0 0.0
    %943 = vmatprep.subr.mxu0 0.0
    %944 = vmatpush2.msra.mxu0 0.0
    %945 = vmatprep.subr.mxu0 0.0
    %946 = vmatpush2.msra.mxu0 0.0
    %947 = vmatprep.subr.mxu0 0.0
    %948 = vmatpush2.msra.mxu0 0.0
    %949 = vmatprep.subr.mxu0 0.0
    %950 = vmatpush2.msra.mxu0 0.0
    %951 = vmatprep.subr.mxu0 0.0
    %952 = vmatpush2.msra.mxu0 0.0
    %953 = vmatprep.subr.mxu0 0.0
    %954 = vmatpush2.msra.mxu0 0.0
    %955 = vmatprep.subr.mxu0 0.0
    %956 = vmatpush2.msra.mxu0 0.0
    %957 = vmatprep.subr.mxu0 0.0
    %958 = vmatpush2.msra.mxu0 0.0
    %959 = vmatprep.subr.mxu0 0.0
    %960 = vmatpush2.msra.mxu0 0.0
    %961 = vmatprep.subr.mxu0 0.0
    %962 = vmatpush2.msra.mxu0 0.0
    %963 = vmatprep.mubr.f32.mxu0 0.0
    %964 = vmatmul.mubr.f32.gmra.mxu0 %v897
    %v965 = vpop.f32.mrf.mxu0
    %v966 = vadd.f32 0.0, %v965
    %v967 = vpop.f32.mrf.mxu0
    %968 = vdwg.mxu0
    %v969 = vadd.f32 %v192, %v966
    %v970 = vxor.u32 %v969, 2147483648
    %v971 = vmul.f32 %v970, 1.442695
    %v972 = vpow.pop %v971
    %v973 = vadd.f32 %v972, 1.0
    %v974 = vrcp.pop %v973
    %v975 = vmul.f32 1.0, %v974
    %v976 = vtanh.pop %v969
    %v977 = vmul.f32 %v975, %v887
    %979 = vrot.lane.b32.xlu0 %v976, 32
    %v980 = vpop.permute.xlu0 %979
    %v982 = vmul.f32 %v975, %v980
    %984 = vrot.lane.b32.xlu0 %v982, 32
    %v985 = vpop.permute.xlu0 %984
    %v987 = vadd.f32 %v977, %v985
    %v988 = vtanh.pop %v987
    %990 = vrot.lane.b32.xlu0 %v988, 32
    %v991 = vpop.permute.xlu0 %990
    %v993 = vmul.f32 %v975, %v991
    %995 = vrot.lane.b32.xlu0 %v993, 64
    %v996 = vpop.permute.xlu0 %995
    %998 = vst.msk [vmem:[#allocation5] sm:$0xff] %vm195, %v996
    %1000 = vrot.lane.b32.xlu0 %v987, 96
    %v1001 = vpop.permute.xlu0 %1000
    %s1003 = scalar_lea.vmem [#allocation5], 16
    %1004 = vst.msk [vmem:[%s1003] sm:$0xff] %vm195, %v1001
    %v1005 = vld [vmem:[%s4] sm:$0xff]
    %v1006 = vld [vmem:[%s4 + $0x8] sm:$0xff]
    %v1007 = vld [vmem:[%s4 + $0x10] sm:$0xff]
    %v1008 = vld [vmem:[%s4 + $0x18] sm:$0xff]
    %v1009 = vld [vmem:[#allocation2] sm:$0xff]
    %v1010 = vld [vmem:[#allocation2 + $0x8] sm:$0xff]
    %v1011 = vld [vmem:[#allocation2 + $0x10] sm:$0xff]
    %v1012 = vld [vmem:[#allocation2 + $0x18] sm:$0xff]
    %v1013 = vld [vmem:[%s6] sm:$0x1]
    %v1015 = vlaneseq
    %v1016 = vshrl.u32 %v1015, 7
    %v1017 = vsub.s32 0, %v1016
    %v1018 = vrot.slane %v1013, %v1017
    %v1020 = vsel %vm195, %v996, 0
    %1022 = vmatprep.subr.mxu0 0.0
    %1023 = vmatpush1.msra.mxu0 0.0
    %1024 = vmatprep.subr.mxu0 0.0
    %1025 = vmatpush1.msra.mxu0 0.0
    %1026 = vmatprep.subr.mxu0 0.0
    %1027 = vmatpush1.msra.mxu0 0.0
    %1028 = vmatprep.subr.mxu0 0.0
    %1029 = vmatpush1.msra.mxu0 0.0
    %1030 = vmatprep.subr.mxu0 0.0
    %1031 = vmatpush1.msra.mxu0 0.0
    %1032 = vmatprep.subr.mxu0 0.0
    %1033 = vmatpush1.msra.mxu0 0.0
    %1034 = vmatprep.subr.mxu0 0.0
    %1035 = vmatpush1.msra.mxu0 0.0
    %1036 = vmatprep.subr.mxu0 0.0
    %1037 = vmatpush1.msra.mxu0 0.0
    %1038 = vmatprep.subr.mxu0 0.0
    %1039 = vmatpush1.msra.mxu0 0.0
    %1040 = vmatprep.subr.mxu0 0.0
    %1041 = vmatpush1.msra.mxu0 0.0
    %1042 = vmatprep.subr.mxu0 0.0
    %1043 = vmatpush1.msra.mxu0 0.0
    %1044 = vmatprep.subr.mxu0 0.0
    %1045 = vmatpush1.msra.mxu0 0.0
    %1046 = vmatprep.subr.mxu0 0.0
    %1047 = vmatpush1.msra.mxu0 %v1008
    %1048 = vmatprep.subr.mxu0 0.0
    %1049 = vmatpush1.msra.mxu0 %v1007
    %1050 = vmatprep.subr.mxu0 0.0
    %1051 = vmatpush1.msra.mxu0 %v1006
    %1052 = vmatprep.subr.mxu0 0.0
    %1053 = vmatpush1.msra.mxu0 %v1005
    %1054 = vmatprep.subr.mxu0 0.0
    %1055 = vmatpush2.msra.mxu0 0.0
    %1056 = vmatprep.subr.mxu0 0.0
    %1057 = vmatpush2.msra.mxu0 0.0
    %1058 = vmatprep.subr.mxu0 0.0
    %1059 = vmatpush2.msra.mxu0 0.0
    %1060 = vmatprep.subr.mxu0 0.0
    %1061 = vmatpush2.msra.mxu0 0.0
    %1062 = vmatprep.subr.mxu0 0.0
    %1063 = vmatpush2.msra.mxu0 0.0
    %1064 = vmatprep.subr.mxu0 0.0
    %1065 = vmatpush2.msra.mxu0 0.0
    %1066 = vmatprep.subr.mxu0 0.0
    %1067 = vmatpush2.msra.mxu0 0.0
    %1068 = vmatprep.subr.mxu0 0.0
    %1069 = vmatpush2.msra.mxu0 0.0
    %1070 = vmatprep.subr.mxu0 0.0
    %1071 = vmatpush2.msra.mxu0 0.0
    %1072 = vmatprep.subr.mxu0 0.0
    %1073 = vmatpush2.msra.mxu0 0.0
    %1074 = vmatprep.subr.mxu0 0.0
    %1075 = vmatpush2.msra.mxu0 0.0
    %1076 = vmatprep.subr.mxu0 0.0
    %1077 = vmatpush2.msra.mxu0 0.0
    %1078 = vmatprep.subr.mxu0 0.0
    %1079 = vmatpush2.msra.mxu0 0.0
    %1080 = vmatprep.subr.mxu0 0.0
    %1081 = vmatpush2.msra.mxu0 0.0
    %1082 = vmatprep.subr.mxu0 0.0
    %1083 = vmatpush2.msra.mxu0 0.0
    %1084 = vmatprep.subr.mxu0 0.0
    %1085 = vmatpush2.msra.mxu0 0.0
    %1086 = vmatprep.mubr.f32.mxu0 0.0
    %1087 = vmatmul.mubr.f32.gmra.mxu0 %v297
    %v1088 = vpop.f32.mrf.mxu0
    %v1089 = vadd.f32 %v1018, %v1088
    %v1090 = vpop.f32.mrf.mxu0
    %1091 = vmatprep.mubr.f32.mxu0 0.0
    %1092 = vmatmul.mubr.f32.gmra.mxu0 %v397
    %v1093 = vpop.f32.mrf.mxu0
    %v1094 = vadd.f32 %v1018, %v1093
    %v1095 = vpop.f32.mrf.mxu0
    %1096 = vmatprep.mubr.f32.mxu0 0.0
    %1097 = vmatmul.mubr.f32.gmra.mxu0 %v497
    %v1098 = vpop.f32.mrf.mxu0
    %v1099 = vadd.f32 %v1018, %v1098
    %v1100 = vpop.f32.mrf.mxu0
    %1101 = vmatprep.mubr.f32.mxu0 0.0
    %1102 = vmatmul.mubr.f32.gmra.mxu0 %v597
    %v1103 = vpop.f32.mrf.mxu0
    %v1104 = vadd.f32 %v1018, %v1103
    %v1105 = vpop.f32.mrf.mxu0
    %1106 = vmatprep.mubr.f32.mxu0 0.0
    %1107 = vmatmul.mubr.f32.gmra.mxu0 %v697
    %v1108 = vpop.f32.mrf.mxu0
    %v1109 = vadd.f32 %v1018, %v1108
    %v1110 = vpop.f32.mrf.mxu0
    %1111 = vmatprep.mubr.f32.mxu0 0.0
    %1112 = vmatmul.mubr.f32.gmra.mxu0 %v797
    %v1113 = vpop.f32.mrf.mxu0
    %v1114 = vadd.f32 %v1018, %v1113
    %v1115 = vpop.f32.mrf.mxu0
    %1116 = vmatprep.mubr.f32.mxu0 0.0
    %1117 = vmatmul.mubr.f32.gmra.mxu0 %v897
    %v1118 = vpop.f32.mrf.mxu0
    %v1119 = vadd.f32 %v1018, %v1118
    %v1120 = vpop.f32.mrf.mxu0
    %1121 = vmatprep.mubr.f32.mxu0 0.0
    %1122 = vmatmul.mubr.f32.gmra.mxu0 %v1020
    %v1123 = vpop.f32.mrf.mxu0
    %v1124 = vadd.f32 %v1018, %v1123
    %v1125 = vpop.f32.mrf.mxu0
    %1126 = vdwg.mxu0
    %1127 = vmatprep.subr.mxu0 0.0
    %1128 = vmatpush1.msra.mxu0 0.0
    %1129 = vmatprep.subr.mxu0 0.0
    %1130 = vmatpush1.msra.mxu0 0.0
    %1131 = vmatprep.subr.mxu0 0.0
    %1132 = vmatpush1.msra.mxu0 0.0
    %1133 = vmatprep.subr.mxu0 0.0
    %1134 = vmatpush1.msra.mxu0 0.0
    %1135 = vmatprep.subr.mxu0 0.0
    %1136 = vmatpush1.msra.mxu0 0.0
    %1137 = vmatprep.subr.mxu0 0.0
    %1138 = vmatpush1.msra.mxu0 0.0
    %1139 = vmatprep.subr.mxu0 0.0
    %1140 = vmatpush1.msra.mxu0 0.0
    %1141 = vmatprep.subr.mxu0 0.0
    %1142 = vmatpush1.msra.mxu0 0.0
    %1143 = vmatprep.subr.mxu0 0.0
    %1144 = vmatpush1.msra.mxu0 0.0
    %1145 = vmatprep.subr.mxu0 0.0
    %1146 = vmatpush1.msra.mxu0 0.0
    %1147 = vmatprep.subr.mxu0 0.0
    %1148 = vmatpush1.msra.mxu0 0.0
    %1149 = vmatprep.subr.mxu0 0.0
    %1150 = vmatpush1.msra.mxu0 0.0
    %1151 = vmatprep.subr.mxu0 0.0
    %1152 = vmatpush1.msra.mxu0 %v1012
    %1153 = vmatprep.subr.mxu0 0.0
    %1154 = vmatpush1.msra.mxu0 %v1011
    %1155 = vmatprep.subr.mxu0 0.0
    %1156 = vmatpush1.msra.mxu0 %v1010
    %1157 = vmatprep.subr.mxu0 0.0
    %1158 = vmatpush1.msra.mxu0 %v1009
    %1159 = vmatprep.subr.mxu0 0.0
    %1160 = vmatpush2.msra.mxu0 0.0
    %1161 = vmatprep.subr.mxu0 0.0
    %1162 = vmatpush2.msra.mxu0 0.0
    %1163 = vmatprep.subr.mxu0 0.0
    %1164 = vmatpush2.msra.mxu0 0.0
    %1165 = vmatprep.subr.mxu0 0.0
    %1166 = vmatpush2.msra.mxu0 0.0
    %1167 = vmatprep.subr.mxu0 0.0
    %1168 = vmatpush2.msra.mxu0 0.0
    %1169 = vmatprep.subr.mxu0 0.0
    %1170 = vmatpush2.msra.mxu0 0.0
    %1171 = vmatprep.subr.mxu0 0.0
    %1172 = vmatpush2.msra.mxu0 0.0
    %1173 = vmatprep.subr.mxu0 0.0
    %1174 = vmatpush2.msra.mxu0 0.0
    %1175 = vmatprep.subr.mxu0 0.0
    %1176 = vmatpush2.msra.mxu0 0.0
    %1177 = vmatprep.subr.mxu0 0.0
    %1178 = vmatpush2.msra.mxu0 0.0
    %1179 = vmatprep.subr.mxu0 0.0
    %1180 = vmatpush2.msra.mxu0 0.0
    %1181 = vmatprep.subr.mxu0 0.0
    %1182 = vmatpush2.msra.mxu0 0.0
    %1183 = vmatprep.subr.mxu0 0.0
    %1184 = vmatpush2.msra.mxu0 0.0
    %1185 = vmatprep.subr.mxu0 0.0
    %1186 = vmatpush2.msra.mxu0 0.0
    %1187 = vmatprep.subr.mxu0 0.0
    %1188 = vmatpush2.msra.mxu0 0.0
    %1189 = vmatprep.subr.mxu0 0.0
    %1190 = vmatpush2.msra.mxu0 0.0
    %1191 = vmatprep.mubr.f32.mxu0 0.0
    %1192 = vmatmul.mubr.f32.gmra.mxu0 %v197
    %v1193 = vpop.f32.mrf.mxu0
    %v1194 = vadd.f32 0.0, %v1193
    %v1195 = vpop.f32.mrf.mxu0
    %1196 = vdwg.mxu0
    %v1197 = vadd.f32 %v1089, %v1194
    %v1198 = vxor.u32 %v1197, 2147483648
    %v1199 = vmul.f32 %v1198, 1.442695
    %v1200 = vpow.pop %v1199
    %v1201 = vadd.f32 %v1200, 1.0
    %v1202 = vrcp.pop %v1201
    %v1203 = vmul.f32 1.0, %v1202
    %v1204 = vtanh.pop %v1197
    %v1205 = vmul.f32 %v1203, 0.0
    %1207 = vrot.lane.b32.xlu0 %v1204, 32
    %v1208 = vpop.permute.xlu0 %1207
    %v1210 = vmul.f32 %v1203, %v1208
    %1212 = vrot.lane.b32.xlu0 %v1210, 32
    %v1213 = vpop.permute.xlu0 %1212
    %v1215 = vadd.f32 %v1205, %v1213
    %v1216 = vtanh.pop %v1215
    %1218 = vrot.lane.b32.xlu0 %v1216, 32
    %v1219 = vpop.permute.xlu0 %1218
    %v1221 = vmul.f32 %v1203, %v1219
    %1223 = vrot.lane.b32.xlu0 %v1221, 64
    %v1224 = vpop.permute.xlu0 %1223
    %v1225 = vsel %vm195, %v1224, 0
    %1227 = vmatprep.subr.mxu0 0.0
    %1228 = vmatpush1.msra.mxu0 0.0
    %1229 = vmatprep.subr.mxu0 0.0
    %1230 = vmatpush1.msra.mxu0 0.0
    %1231 = vmatprep.subr.mxu0 0.0
    %1232 = vmatpush1.msra.mxu0 0.0
    %1233 = vmatprep.subr.mxu0 0.0
    %1234 = vmatpush1.msra.mxu0 0.0
    %1235 = vmatprep.subr.mxu0 0.0
    %1236 = vmatpush1.msra.mxu0 0.0
    %1237 = vmatprep.subr.mxu0 0.0
    %1238 = vmatpush1.msra.mxu0 0.0
    %1239 = vmatprep.subr.mxu0 0.0
    %1240 = vmatpush1.msra.mxu0 0.0
    %1241 = vmatprep.subr.mxu0 0.0
    %1242 = vmatpush1.msra.mxu0 0.0
    %1243 = vmatprep.subr.mxu0 0.0
    %1244 = vmatpush1.msra.mxu0 0.0
    %1245 = vmatprep.subr.mxu0 0.0
    %1246 = vmatpush1.msra.mxu0 0.0
    %1247 = vmatprep.subr.mxu0 0.0
    %1248 = vmatpush1.msra.mxu0 0.0
    %1249 = vmatprep.subr.mxu0 0.0
    %1250 = vmatpush1.msra.mxu0 0.0
    %1251 = vmatprep.subr.mxu0 0.0
    %1252 = vmatpush1.msra.mxu0 %v1012
    %1253 = vmatprep.subr.mxu0 0.0
    %1254 = vmatpush1.msra.mxu0 %v1011
    %1255 = vmatprep.subr.mxu0 0.0
    %1256 = vmatpush1.msra.mxu0 %v1010
    %1257 = vmatprep.subr.mxu0 0.0
    %1258 = vmatpush1.msra.mxu0 %v1009
    %1259 = vmatprep.subr.mxu0 0.0
    %1260 = vmatpush2.msra.mxu0 0.0
    %1261 = vmatprep.subr.mxu0 0.0
    %1262 = vmatpush2.msra.mxu0 0.0
    %1263 = vmatprep.subr.mxu0 0.0
    %1264 = vmatpush2.msra.mxu0 0.0
    %1265 = vmatprep.subr.mxu0 0.0
    %1266 = vmatpush2.msra.mxu0 0.0
    %1267 = vmatprep.subr.mxu0 0.0
    %1268 = vmatpush2.msra.mxu0 0.0
    %1269 = vmatprep.subr.mxu0 0.0
    %1270 = vmatpush2.msra.mxu0 0.0
    %1271 = vmatprep.subr.mxu0 0.0
    %1272 = vmatpush2.msra.mxu0 0.0
    %1273 = vmatprep.subr.mxu0 0.0
    %1274 = vmatpush2.msra.mxu0 0.0
    %1275 = vmatprep.subr.mxu0 0.0
    %1276 = vmatpush2.msra.mxu0 0.0
    %1277 = vmatprep.subr.mxu0 0.0
    %1278 = vmatpush2.msra.mxu0 0.0
    %1279 = vmatprep.subr.mxu0 0.0
    %1280 = vmatpush2.msra.mxu0 0.0
    %1281 = vmatprep.subr.mxu0 0.0
    %1282 = vmatpush2.msra.mxu0 0.0
    %1283 = vmatprep.subr.mxu0 0.0
    %1284 = vmatpush2.msra.mxu0 0.0
    %1285 = vmatprep.subr.mxu0 0.0
    %1286 = vmatpush2.msra.mxu0 0.0
    %1287 = vmatprep.subr.mxu0 0.0
    %1288 = vmatpush2.msra.mxu0 0.0
    %1289 = vmatprep.subr.mxu0 0.0
    %1290 = vmatpush2.msra.mxu0 0.0
    %1291 = vmatprep.mubr.f32.mxu0 0.0
    %1292 = vmatmul.mubr.f32.gmra.mxu0 %v1225
    %v1293 = vpop.f32.mrf.mxu0
    %v1294 = vadd.f32 0.0, %v1293
    %v1295 = vpop.f32.mrf.mxu0
    %1296 = vdwg.mxu0
    %v1297 = vadd.f32 %v1094, %v1294
    %v1298 = vxor.u32 %v1297, 2147483648
    %v1299 = vmul.f32 %v1298, 1.442695
    %v1300 = vpow.pop %v1299
    %v1301 = vadd.f32 %v1300, 1.0
    %v1302 = vrcp.pop %v1301
    %v1303 = vmul.f32 1.0, %v1302
    %v1304 = vtanh.pop %v1297
    %v1305 = vmul.f32 %v1303, %v1215
    %1307 = vrot.lane.b32.xlu0 %v1304, 32
    %v1308 = vpop.permute.xlu0 %1307
    %v1310 = vmul.f32 %v1303, %v1308
    %1312 = vrot.lane.b32.xlu0 %v1310, 32
    %v1313 = vpop.permute.xlu0 %1312
    %v1315 = vadd.f32 %v1305, %v1313
    %v1316 = vtanh.pop %v1315
    %1318 = vrot.lane.b32.xlu0 %v1316, 32
    %v1319 = vpop.permute.xlu0 %1318
    %v1321 = vmul.f32 %v1303, %v1319
    %1323 = vrot.lane.b32.xlu0 %v1321, 64
    %v1324 = vpop.permute.xlu0 %1323
    %v1325 = vsel %vm195, %v1324, 0
    %1327 = vmatprep.subr.mxu0 0.0
    %1328 = vmatpush1.msra.mxu0 0.0
    %1329 = vmatprep.subr.mxu0 0.0
    %1330 = vmatpush1.msra.mxu0 0.0
    %1331 = vmatprep.subr.mxu0 0.0
    %1332 = vmatpush1.msra.mxu0 0.0
    %1333 = vmatprep.subr.mxu0 0.0
    %1334 = vmatpush1.msra.mxu0 0.0
    %1335 = vmatprep.subr.mxu0 0.0
    %1336 = vmatpush1.msra.mxu0 0.0
    %1337 = vmatprep.subr.mxu0 0.0
    %1338 = vmatpush1.msra.mxu0 0.0
    %1339 = vmatprep.subr.mxu0 0.0
    %1340 = vmatpush1.msra.mxu0 0.0
    %1341 = vmatprep.subr.mxu0 0.0
    %1342 = vmatpush1.msra.mxu0 0.0
    %1343 = vmatprep.subr.mxu0 0.0
    %1344 = vmatpush1.msra.mxu0 0.0
    %1345 = vmatprep.subr.mxu0 0.0
    %1346 = vmatpush1.msra.mxu0 0.0
    %1347 = vmatprep.subr.mxu0 0.0
    %1348 = vmatpush1.msra.mxu0 0.0
    %1349 = vmatprep.subr.mxu0 0.0
    %1350 = vmatpush1.msra.mxu0 0.0
    %1351 = vmatprep.subr.mxu0 0.0
    %1352 = vmatpush1.msra.mxu0 %v1012
    %1353 = vmatprep.subr.mxu0 0.0
    %1354 = vmatpush1.msra.mxu0 %v1011
    %1355 = vmatprep.subr.mxu0 0.0
    %1356 = vmatpush1.msra.mxu0 %v1010
    %1357 = vmatprep.subr.mxu0 0.0
    %1358 = vmatpush1.msra.mxu0 %v1009
    %1359 = vmatprep.subr.mxu0 0.0
    %1360 = vmatpush2.msra.mxu0 0.0
    %1361 = vmatprep.subr.mxu0 0.0
    %1362 = vmatpush2.msra.mxu0 0.0
    %1363 = vmatprep.subr.mxu0 0.0
    %1364 = vmatpush2.msra.mxu0 0.0
    %1365 = vmatprep.subr.mxu0 0.0
    %1366 = vmatpush2.msra.mxu0 0.0
    %1367 = vmatprep.subr.mxu0 0.0
    %1368 = vmatpush2.msra.mxu0 0.0
    %1369 = vmatprep.subr.mxu0 0.0
    %1370 = vmatpush2.msra.mxu0 0.0
    %1371 = vmatprep.subr.mxu0 0.0
    %1372 = vmatpush2.msra.mxu0 0.0
    %1373 = vmatprep.subr.mxu0 0.0
    %1374 = vmatpush2.msra.mxu0 0.0
    %1375 = vmatprep.subr.mxu0 0.0
    %1376 = vmatpush2.msra.mxu0 0.0
    %1377 = vmatprep.subr.mxu0 0.0
    %1378 = vmatpush2.msra.mxu0 0.0
    %1379 = vmatprep.subr.mxu0 0.0
    %1380 = vmatpush2.msra.mxu0 0.0
    %1381 = vmatprep.subr.mxu0 0.0
    %1382 = vmatpush2.msra.mxu0 0.0
    %1383 = vmatprep.subr.mxu0 0.0
    %1384 = vmatpush2.msra.mxu0 0.0
    %1385 = vmatprep.subr.mxu0 0.0
    %1386 = vmatpush2.msra.mxu0 0.0
    %1387 = vmatprep.subr.mxu0 0.0
    %1388 = vmatpush2.msra.mxu0 0.0
    %1389 = vmatprep.subr.mxu0 0.0
    %1390 = vmatpush2.msra.mxu0 0.0
    %1391 = vmatprep.mubr.f32.mxu0 0.0
    %1392 = vmatmul.mubr.f32.gmra.mxu0 %v1325
    %v1393 = vpop.f32.mrf.mxu0
    %v1394 = vadd.f32 0.0, %v1393
    %v1395 = vpop.f32.mrf.mxu0
    %1396 = vdwg.mxu0
    %v1397 = vadd.f32 %v1099, %v1394
    %v1398 = vxor.u32 %v1397, 2147483648
    %v1399 = vmul.f32 %v1398, 1.442695
    %v1400 = vpow.pop %v1399
    %v1401 = vadd.f32 %v1400, 1.0
    %v1402 = vrcp.pop %v1401
    %v1403 = vmul.f32 1.0, %v1402
    %v1404 = vtanh.pop %v1397
    %v1405 = vmul.f32 %v1403, %v1315
    %1407 = vrot.lane.b32.xlu0 %v1404, 32
    %v1408 = vpop.permute.xlu0 %1407
    %v1410 = vmul.f32 %v1403, %v1408
    %1412 = vrot.lane.b32.xlu0 %v1410, 32
    %v1413 = vpop.permute.xlu0 %1412
    %v1415 = vadd.f32 %v1405, %v1413
    %v1416 = vtanh.pop %v1415
    %1418 = vrot.lane.b32.xlu0 %v1416, 32
    %v1419 = vpop.permute.xlu0 %1418
    %v1421 = vmul.f32 %v1403, %v1419
    %1423 = vrot.lane.b32.xlu0 %v1421, 64
    %v1424 = vpop.permute.xlu0 %1423
    %v1425 = vsel %vm195, %v1424, 0
    %1427 = vmatprep.subr.mxu0 0.0
    %1428 = vmatpush1.msra.mxu0 0.0
    %1429 = vmatprep.subr.mxu0 0.0
    %1430 = vmatpush1.msra.mxu0 0.0
    %1431 = vmatprep.subr.mxu0 0.0
    %1432 = vmatpush1.msra.mxu0 0.0
    %1433 = vmatprep.subr.mxu0 0.0
    %1434 = vmatpush1.msra.mxu0 0.0
    %1435 = vmatprep.subr.mxu0 0.0
    %1436 = vmatpush1.msra.mxu0 0.0
    %1437 = vmatprep.subr.mxu0 0.0
    %1438 = vmatpush1.msra.mxu0 0.0
    %1439 = vmatprep.subr.mxu0 0.0
    %1440 = vmatpush1.msra.mxu0 0.0
    %1441 = vmatprep.subr.mxu0 0.0
    %1442 = vmatpush1.msra.mxu0 0.0
    %1443 = vmatprep.subr.mxu0 0.0
    %1444 = vmatpush1.msra.mxu0 0.0
    %1445 = vmatprep.subr.mxu0 0.0
    %1446 = vmatpush1.msra.mxu0 0.0
    %1447 = vmatprep.subr.mxu0 0.0
    %1448 = vmatpush1.msra.mxu0 0.0
    %1449 = vmatprep.subr.mxu0 0.0
    %1450 = vmatpush1.msra.mxu0 0.0
    %1451 = vmatprep.subr.mxu0 0.0
    %1452 = vmatpush1.msra.mxu0 %v1012
    %1453 = vmatprep.subr.mxu0 0.0
    %1454 = vmatpush1.msra.mxu0 %v1011
    %1455 = vmatprep.subr.mxu0 0.0
    %1456 = vmatpush1.msra.mxu0 %v1010
    %1457 = vmatprep.subr.mxu0 0.0
    %1458 = vmatpush1.msra.mxu0 %v1009
    %1459 = vmatprep.subr.mxu0 0.0
    %1460 = vmatpush2.msra.mxu0 0.0
    %1461 = vmatprep.subr.mxu0 0.0
    %1462 = vmatpush2.msra.mxu0 0.0
    %1463 = vmatprep.subr.mxu0 0.0
    %1464 = vmatpush2.msra.mxu0 0.0
    %1465 = vmatprep.subr.mxu0 0.0
    %1466 = vmatpush2.msra.mxu0 0.0
    %1467 = vmatprep.subr.mxu0 0.0
    %1468 = vmatpush2.msra.mxu0 0.0
    %1469 = vmatprep.subr.mxu0 0.0
    %1470 = vmatpush2.msra.mxu0 0.0
    %1471 = vmatprep.subr.mxu0 0.0
    %1472 = vmatpush2.msra.mxu0 0.0
    %1473 = vmatprep.subr.mxu0 0.0
    %1474 = vmatpush2.msra.mxu0 0.0
    %1475 = vmatprep.subr.mxu0 0.0
    %1476 = vmatpush2.msra.mxu0 0.0
    %1477 = vmatprep.subr.mxu0 0.0
    %1478 = vmatpush2.msra.mxu0 0.0
    %1479 = vmatprep.subr.mxu0 0.0
    %1480 = vmatpush2.msra.mxu0 0.0
    %1481 = vmatprep.subr.mxu0 0.0
    %1482 = vmatpush2.msra.mxu0 0.0
    %1483 = vmatprep.subr.mxu0 0.0
    %1484 = vmatpush2.msra.mxu0 0.0
    %1485 = vmatprep.subr.mxu0 0.0
    %1486 = vmatpush2.msra.mxu0 0.0
    %1487 = vmatprep.subr.mxu0 0.0
    %1488 = vmatpush2.msra.mxu0 0.0
    %1489 = vmatprep.subr.mxu0 0.0
    %1490 = vmatpush2.msra.mxu0 0.0
    %1491 = vmatprep.mubr.f32.mxu0 0.0
    %1492 = vmatmul.mubr.f32.gmra.mxu0 %v1425
    %v1493 = vpop.f32.mrf.mxu0
    %v1494 = vadd.f32 0.0, %v1493
    %v1495 = vpop.f32.mrf.mxu0
    %1496 = vdwg.mxu0
    %v1497 = vadd.f32 %v1104, %v1494
    %v1498 = vxor.u32 %v1497, 2147483648
    %v1499 = vmul.f32 %v1498, 1.442695
    %v1500 = vpow.pop %v1499
    %v1501 = vadd.f32 %v1500, 1.0
    %v1502 = vrcp.pop %v1501
    %v1503 = vmul.f32 1.0, %v1502
    %v1504 = vtanh.pop %v1497
    %v1505 = vmul.f32 %v1503, %v1415
    %1507 = vrot.lane.b32.xlu0 %v1504, 32
    %v1508 = vpop.permute.xlu0 %1507
    %v1510 = vmul.f32 %v1503, %v1508
    %1512 = vrot.lane.b32.xlu0 %v1510, 32
    %v1513 = vpop.permute.xlu0 %1512
    %v1515 = vadd.f32 %v1505, %v1513
    %v1516 = vtanh.pop %v1515
    %1518 = vrot.lane.b32.xlu0 %v1516, 32
    %v1519 = vpop.permute.xlu0 %1518
    %v1521 = vmul.f32 %v1503, %v1519
    %1523 = vrot.lane.b32.xlu0 %v1521, 64
    %v1524 = vpop.permute.xlu0 %1523
    %v1525 = vsel %vm195, %v1524, 0
    %1527 = vmatprep.subr.mxu0 0.0
    %1528 = vmatpush1.msra.mxu0 0.0
    %1529 = vmatprep.subr.mxu0 0.0
    %1530 = vmatpush1.msra.mxu0 0.0
    %1531 = vmatprep.subr.mxu0 0.0
    %1532 = vmatpush1.msra.mxu0 0.0
    %1533 = vmatprep.subr.mxu0 0.0
    %1534 = vmatpush1.msra.mxu0 0.0
    %1535 = vmatprep.subr.mxu0 0.0
    %1536 = vmatpush1.msra.mxu0 0.0
    %1537 = vmatprep.subr.mxu0 0.0
    %1538 = vmatpush1.msra.mxu0 0.0
    %1539 = vmatprep.subr.mxu0 0.0
    %1540 = vmatpush1.msra.mxu0 0.0
    %1541 = vmatprep.subr.mxu0 0.0
    %1542 = vmatpush1.msra.mxu0 0.0
    %1543 = vmatprep.subr.mxu0 0.0
    %1544 = vmatpush1.msra.mxu0 0.0
    %1545 = vmatprep.subr.mxu0 0.0
    %1546 = vmatpush1.msra.mxu0 0.0
    %1547 = vmatprep.subr.mxu0 0.0
    %1548 = vmatpush1.msra.mxu0 0.0
    %1549 = vmatprep.subr.mxu0 0.0
    %1550 = vmatpush1.msra.mxu0 0.0
    %1551 = vmatprep.subr.mxu0 0.0
    %1552 = vmatpush1.msra.mxu0 %v1012
    %1553 = vmatprep.subr.mxu0 0.0
    %1554 = vmatpush1.msra.mxu0 %v1011
    %1555 = vmatprep.subr.mxu0 0.0
    %1556 = vmatpush1.msra.mxu0 %v1010
    %1557 = vmatprep.subr.mxu0 0.0
    %1558 = vmatpush1.msra.mxu0 %v1009
    %1559 = vmatprep.subr.mxu0 0.0
    %1560 = vmatpush2.msra.mxu0 0.0
    %1561 = vmatprep.subr.mxu0 0.0
    %1562 = vmatpush2.msra.mxu0 0.0
    %1563 = vmatprep.subr.mxu0 0.0
    %1564 = vmatpush2.msra.mxu0 0.0
    %1565 = vmatprep.subr.mxu0 0.0
    %1566 = vmatpush2.msra.mxu0 0.0
    %1567 = vmatprep.subr.mxu0 0.0
    %1568 = vmatpush2.msra.mxu0 0.0
    %1569 = vmatprep.subr.mxu0 0.0
    %1570 = vmatpush2.msra.mxu0 0.0
    %1571 = vmatprep.subr.mxu0 0.0
    %1572 = vmatpush2.msra.mxu0 0.0
    %1573 = vmatprep.subr.mxu0 0.0
    %1574 = vmatpush2.msra.mxu0 0.0
    %1575 = vmatprep.subr.mxu0 0.0
    %1576 = vmatpush2.msra.mxu0 0.0
    %1577 = vmatprep.subr.mxu0 0.0
    %1578 = vmatpush2.msra.mxu0 0.0
    %1579 = vmatprep.subr.mxu0 0.0
    %1580 = vmatpush2.msra.mxu0 0.0
    %1581 = vmatprep.subr.mxu0 0.0
    %1582 = vmatpush2.msra.mxu0 0.0
    %1583 = vmatprep.subr.mxu0 0.0
    %1584 = vmatpush2.msra.mxu0 0.0
    %1585 = vmatprep.subr.mxu0 0.0
    %1586 = vmatpush2.msra.mxu0 0.0
    %1587 = vmatprep.subr.mxu0 0.0
    %1588 = vmatpush2.msra.mxu0 0.0
    %1589 = vmatprep.subr.mxu0 0.0
    %1590 = vmatpush2.msra.mxu0 0.0
    %1591 = vmatprep.mubr.f32.mxu0 0.0
    %1592 = vmatmul.mubr.f32.gmra.mxu0 %v1525
    %v1593 = vpop.f32.mrf.mxu0
    %v1594 = vadd.f32 0.0, %v1593
    %v1595 = vpop.f32.mrf.mxu0
    %1596 = vdwg.mxu0
    %v1597 = vadd.f32 %v1109, %v1594
    %v1598 = vxor.u32 %v1597, 2147483648
    %v1599 = vmul.f32 %v1598, 1.442695
    %v1600 = vpow.pop %v1599
    %v1601 = vadd.f32 %v1600, 1.0
    %v1602 = vrcp.pop %v1601
    %v1603 = vmul.f32 1.0, %v1602
    %v1604 = vtanh.pop %v1597
    %v1605 = vmul.f32 %v1603, %v1515
    %1607 = vrot.lane.b32.xlu0 %v1604, 32
    %v1608 = vpop.permute.xlu0 %1607
    %v1610 = vmul.f32 %v1603, %v1608
    %1612 = vrot.lane.b32.xlu0 %v1610, 32
    %v1613 = vpop.permute.xlu0 %1612
    %v1615 = vadd.f32 %v1605, %v1613
    %v1616 = vtanh.pop %v1615
    %1618 = vrot.lane.b32.xlu0 %v1616, 32
    %v1619 = vpop.permute.xlu0 %1618
    %v1621 = vmul.f32 %v1603, %v1619
    %1623 = vrot.lane.b32.xlu0 %v1621, 64
    %v1624 = vpop.permute.xlu0 %1623
    %v1625 = vsel %vm195, %v1624, 0
    %1627 = vmatprep.subr.mxu0 0.0
    %1628 = vmatpush1.msra.mxu0 0.0
    %1629 = vmatprep.subr.mxu0 0.0
    %1630 = vmatpush1.msra.mxu0 0.0
    %1631 = vmatprep.subr.mxu0 0.0
    %1632 = vmatpush1.msra.mxu0 0.0
    %1633 = vmatprep.subr.mxu0 0.0
    %1634 = vmatpush1.msra.mxu0 0.0
    %1635 = vmatprep.subr.mxu0 0.0
    %1636 = vmatpush1.msra.mxu0 0.0
    %1637 = vmatprep.subr.mxu0 0.0
    %1638 = vmatpush1.msra.mxu0 0.0
    %1639 = vmatprep.subr.mxu0 0.0
    %1640 = vmatpush1.msra.mxu0 0.0
    %1641 = vmatprep.subr.mxu0 0.0
    %1642 = vmatpush1.msra.mxu0 0.0
    %1643 = vmatprep.subr.mxu0 0.0
    %1644 = vmatpush1.msra.mxu0 0.0
    %1645 = vmatprep.subr.mxu0 0.0
    %1646 = vmatpush1.msra.mxu0 0.0
    %1647 = vmatprep.subr.mxu0 0.0
    %1648 = vmatpush1.msra.mxu0 0.0
    %1649 = vmatprep.subr.mxu0 0.0
    %1650 = vmatpush1.msra.mxu0 0.0
    %1651 = vmatprep.subr.mxu0 0.0
    %1652 = vmatpush1.msra.mxu0 %v1012
    %1653 = vmatprep.subr.mxu0 0.0
    %1654 = vmatpush1.msra.mxu0 %v1011
    %1655 = vmatprep.subr.mxu0 0.0
    %1656 = vmatpush1.msra.mxu0 %v1010
    %1657 = vmatprep.subr.mxu0 0.0
    %1658 = vmatpush1.msra.mxu0 %v1009
    %1659 = vmatprep.subr.mxu0 0.0
    %1660 = vmatpush2.msra.mxu0 0.0
    %1661 = vmatprep.subr.mxu0 0.0
    %1662 = vmatpush2.msra.mxu0 0.0
    %1663 = vmatprep.subr.mxu0 0.0
    %1664 = vmatpush2.msra.mxu0 0.0
    %1665 = vmatprep.subr.mxu0 0.0
    %1666 = vmatpush2.msra.mxu0 0.0
    %1667 = vmatprep.subr.mxu0 0.0
    %1668 = vmatpush2.msra.mxu0 0.0
    %1669 = vmatprep.subr.mxu0 0.0
    %1670 = vmatpush2.msra.mxu0 0.0
    %1671 = vmatprep.subr.mxu0 0.0
    %1672 = vmatpush2.msra.mxu0 0.0
    %1673 = vmatprep.subr.mxu0 0.0
    %1674 = vmatpush2.msra.mxu0 0.0
    %1675 = vmatprep.subr.mxu0 0.0
    %1676 = vmatpush2.msra.mxu0 0.0
    %1677 = vmatprep.subr.mxu0 0.0
    %1678 = vmatpush2.msra.mxu0 0.0
    %1679 = vmatprep.subr.mxu0 0.0
    %1680 = vmatpush2.msra.mxu0 0.0
    %1681 = vmatprep.subr.mxu0 0.0
    %1682 = vmatpush2.msra.mxu0 0.0
    %1683 = vmatprep.subr.mxu0 0.0
    %1684 = vmatpush2.msra.mxu0 0.0
    %1685 = vmatprep.subr.mxu0 0.0
    %1686 = vmatpush2.msra.mxu0 0.0
    %1687 = vmatprep.subr.mxu0 0.0
    %1688 = vmatpush2.msra.mxu0 0.0
    %1689 = vmatprep.subr.mxu0 0.0
    %1690 = vmatpush2.msra.mxu0 0.0
    %1691 = vmatprep.mubr.f32.mxu0 0.0
    %1692 = vmatmul.mubr.f32.gmra.mxu0 %v1625
    %v1693 = vpop.f32.mrf.mxu0
    %v1694 = vadd.f32 0.0, %v1693
    %v1695 = vpop.f32.mrf.mxu0
    %1696 = vdwg.mxu0
    %v1697 = vadd.f32 %v1114, %v1694
    %v1698 = vxor.u32 %v1697, 2147483648
    %v1699 = vmul.f32 %v1698, 1.442695
    %v1700 = vpow.pop %v1699
    %v1701 = vadd.f32 %v1700, 1.0
    %v1702 = vrcp.pop %v1701
    %v1703 = vmul.f32 1.0, %v1702
    %v1704 = vtanh.pop %v1697
    %v1705 = vmul.f32 %v1703, %v1615
    %1707 = vrot.lane.b32.xlu0 %v1704, 32
    %v1708 = vpop.permute.xlu0 %1707
    %v1710 = vmul.f32 %v1703, %v1708
    %1712 = vrot.lane.b32.xlu0 %v1710, 32
    %v1713 = vpop.permute.xlu0 %1712
    %v1715 = vadd.f32 %v1705, %v1713
    %v1716 = vtanh.pop %v1715
    %1718 = vrot.lane.b32.xlu0 %v1716, 32
    %v1719 = vpop.permute.xlu0 %1718
    %v1721 = vmul.f32 %v1703, %v1719
    %1723 = vrot.lane.b32.xlu0 %v1721, 64
    %v1724 = vpop.permute.xlu0 %1723
    %v1725 = vsel %vm195, %v1724, 0
    %1727 = vmatprep.subr.mxu0 0.0
    %1728 = vmatpush1.msra.mxu0 0.0
    %1729 = vmatprep.subr.mxu0 0.0
    %1730 = vmatpush1.msra.mxu0 0.0
    %1731 = vmatprep.subr.mxu0 0.0
    %1732 = vmatpush1.msra.mxu0 0.0
    %1733 = vmatprep.subr.mxu0 0.0
    %1734 = vmatpush1.msra.mxu0 0.0
    %1735 = vmatprep.subr.mxu0 0.0
    %1736 = vmatpush1.msra.mxu0 0.0
    %1737 = vmatprep.subr.mxu0 0.0
    %1738 = vmatpush1.msra.mxu0 0.0
    %1739 = vmatprep.subr.mxu0 0.0
    %1740 = vmatpush1.msra.mxu0 0.0
    %1741 = vmatprep.subr.mxu0 0.0
    %1742 = vmatpush1.msra.mxu0 0.0
    %1743 = vmatprep.subr.mxu0 0.0
    %1744 = vmatpush1.msra.mxu0 0.0
    %1745 = vmatprep.subr.mxu0 0.0
    %1746 = vmatpush1.msra.mxu0 0.0
    %1747 = vmatprep.subr.mxu0 0.0
    %1748 = vmatpush1.msra.mxu0 0.0
    %1749 = vmatprep.subr.mxu0 0.0
    %1750 = vmatpush1.msra.mxu0 0.0
    %1751 = vmatprep.subr.mxu0 0.0
    %1752 = vmatpush1.msra.mxu0 %v1012
    %1753 = vmatprep.subr.mxu0 0.0
    %1754 = vmatpush1.msra.mxu0 %v1011
    %1755 = vmatprep.subr.mxu0 0.0
    %1756 = vmatpush1.msra.mxu0 %v1010
    %1757 = vmatprep.subr.mxu0 0.0
    %1758 = vmatpush1.msra.mxu0 %v1009
    %1759 = vmatprep.subr.mxu0 0.0
    %1760 = vmatpush2.msra.mxu0 0.0
    %1761 = vmatprep.subr.mxu0 0.0
    %1762 = vmatpush2.msra.mxu0 0.0
    %1763 = vmatprep.subr.mxu0 0.0
    %1764 = vmatpush2.msra.mxu0 0.0
    %1765 = vmatprep.subr.mxu0 0.0
    %1766 = vmatpush2.msra.mxu0 0.0
    %1767 = vmatprep.subr.mxu0 0.0
    %1768 = vmatpush2.msra.mxu0 0.0
    %1769 = vmatprep.subr.mxu0 0.0
    %1770 = vmatpush2.msra.mxu0 0.0
    %1771 = vmatprep.subr.mxu0 0.0
    %1772 = vmatpush2.msra.mxu0 0.0
    %1773 = vmatprep.subr.mxu0 0.0
    %1774 = vmatpush2.msra.mxu0 0.0
    %1775 = vmatprep.subr.mxu0 0.0
    %1776 = vmatpush2.msra.mxu0 0.0
    %1777 = vmatprep.subr.mxu0 0.0
    %1778 = vmatpush2.msra.mxu0 0.0
    %1779 = vmatprep.subr.mxu0 0.0
    %1780 = vmatpush2.msra.mxu0 0.0
    %1781 = vmatprep.subr.mxu0 0.0
    %1782 = vmatpush2.msra.mxu0 0.0
    %1783 = vmatprep.subr.mxu0 0.0
    %1784 = vmatpush2.msra.mxu0 0.0
    %1785 = vmatprep.subr.mxu0 0.0
    %1786 = vmatpush2.msra.mxu0 0.0
    %1787 = vmatprep.subr.mxu0 0.0
    %1788 = vmatpush2.msra.mxu0 0.0
    %1789 = vmatprep.subr.mxu0 0.0
    %1790 = vmatpush2.msra.mxu0 0.0
    %1791 = vmatprep.mubr.f32.mxu0 0.0
    %1792 = vmatmul.mubr.f32.gmra.mxu0 %v1725
    %v1793 = vpop.f32.mrf.mxu0
    %v1794 = vadd.f32 0.0, %v1793
    %v1795 = vpop.f32.mrf.mxu0
    %1796 = vdwg.mxu0
    %v1797 = vadd.f32 %v1119, %v1794
    %v1798 = vxor.u32 %v1797, 2147483648
    %v1799 = vmul.f32 %v1798, 1.442695
    %v1800 = vpow.pop %v1799
    %v1801 = vadd.f32 %v1800, 1.0
    %v1802 = vrcp.pop %v1801
    %v1803 = vmul.f32 1.0, %v1802
    %v1804 = vtanh.pop %v1797
    %v1805 = vmul.f32 %v1803, %v1715
    %1807 = vrot.lane.b32.xlu0 %v1804, 32
    %v1808 = vpop.permute.xlu0 %1807
    %v1810 = vmul.f32 %v1803, %v1808
    %1812 = vrot.lane.b32.xlu0 %v1810, 32
    %v1813 = vpop.permute.xlu0 %1812
    %v1815 = vadd.f32 %v1805, %v1813
    %v1816 = vtanh.pop %v1815
    %1818 = vrot.lane.b32.xlu0 %v1816, 32
    %v1819 = vpop.permute.xlu0 %1818
    %v1821 = vmul.f32 %v1803, %v1819
    %1823 = vrot.lane.b32.xlu0 %v1821, 64
    %v1824 = vpop.permute.xlu0 %1823
    %v1825 = vsel %vm195, %v1824, 0
    %1827 = vmatprep.subr.mxu0 0.0
    %1828 = vmatpush1.msra.mxu0 0.0
    %1829 = vmatprep.subr.mxu0 0.0
    %1830 = vmatpush1.msra.mxu0 0.0
    %1831 = vmatprep.subr.mxu0 0.0
    %1832 = vmatpush1.msra.mxu0 0.0
    %1833 = vmatprep.subr.mxu0 0.0
    %1834 = vmatpush1.msra.mxu0 0.0
    %1835 = vmatprep.subr.mxu0 0.0
    %1836 = vmatpush1.msra.mxu0 0.0
    %1837 = vmatprep.subr.mxu0 0.0
    %1838 = vmatpush1.msra.mxu0 0.0
    %1839 = vmatprep.subr.mxu0 0.0
    %1840 = vmatpush1.msra.mxu0 0.0
    %1841 = vmatprep.subr.mxu0 0.0
    %1842 = vmatpush1.msra.mxu0 0.0
    %1843 = vmatprep.subr.mxu0 0.0
    %1844 = vmatpush1.msra.mxu0 0.0
    %1845 = vmatprep.subr.mxu0 0.0
    %1846 = vmatpush1.msra.mxu0 0.0
    %1847 = vmatprep.subr.mxu0 0.0
    %1848 = vmatpush1.msra.mxu0 0.0
    %1849 = vmatprep.subr.mxu0 0.0
    %1850 = vmatpush1.msra.mxu0 0.0
    %1851 = vmatprep.subr.mxu0 0.0
    %1852 = vmatpush1.msra.mxu0 %v1012
    %1853 = vmatprep.subr.mxu0 0.0
    %1854 = vmatpush1.msra.mxu0 %v1011
    %1855 = vmatprep.subr.mxu0 0.0
    %1856 = vmatpush1.msra.mxu0 %v1010
    %1857 = vmatprep.subr.mxu0 0.0
    %1858 = vmatpush1.msra.mxu0 %v1009
    %1859 = vmatprep.subr.mxu0 0.0
    %1860 = vmatpush2.msra.mxu0 0.0
    %1861 = vmatprep.subr.mxu0 0.0
    %1862 = vmatpush2.msra.mxu0 0.0
    %1863 = vmatprep.subr.mxu0 0.0
    %1864 = vmatpush2.msra.mxu0 0.0
    %1865 = vmatprep.subr.mxu0 0.0
    %1866 = vmatpush2.msra.mxu0 0.0
    %1867 = vmatprep.subr.mxu0 0.0
    %1868 = vmatpush2.msra.mxu0 0.0
    %1869 = vmatprep.subr.mxu0 0.0
    %1870 = vmatpush2.msra.mxu0 0.0
    %1871 = vmatprep.subr.mxu0 0.0
    %1872 = vmatpush2.msra.mxu0 0.0
    %1873 = vmatprep.subr.mxu0 0.0
    %1874 = vmatpush2.msra.mxu0 0.0
    %1875 = vmatprep.subr.mxu0 0.0
    %1876 = vmatpush2.msra.mxu0 0.0
    %1877 = vmatprep.subr.mxu0 0.0
    %1878 = vmatpush2.msra.mxu0 0.0
    %1879 = vmatprep.subr.mxu0 0.0
    %1880 = vmatpush2.msra.mxu0 0.0
    %1881 = vmatprep.subr.mxu0 0.0
    %1882 = vmatpush2.msra.mxu0 0.0
    %1883 = vmatprep.subr.mxu0 0.0
    %1884 = vmatpush2.msra.mxu0 0.0
    %1885 = vmatprep.subr.mxu0 0.0
    %1886 = vmatpush2.msra.mxu0 0.0
    %1887 = vmatprep.subr.mxu0 0.0
    %1888 = vmatpush2.msra.mxu0 0.0
    %1889 = vmatprep.subr.mxu0 0.0
    %1890 = vmatpush2.msra.mxu0 0.0
    %1891 = vmatprep.mubr.f32.mxu0 0.0
    %1892 = vmatmul.mubr.f32.gmra.mxu0 %v1825
    %v1893 = vpop.f32.mrf.mxu0
    %v1894 = vadd.f32 0.0, %v1893
    %v1895 = vpop.f32.mrf.mxu0
    %1896 = vdwg.mxu0
    %v1897 = vadd.f32 %v1124, %v1894
    %v1898 = vxor.u32 %v1897, 2147483648
    %v1899 = vmul.f32 %v1898, 1.442695
    %v1900 = vpow.pop %v1899
    %v1901 = vadd.f32 %v1900, 1.0
    %v1902 = vrcp.pop %v1901
    %v1903 = vmul.f32 1.0, %v1902
    %v1904 = vtanh.pop %v1897
    %v1905 = vmul.f32 %v1903, %v1815
    %1907 = vrot.lane.b32.xlu0 %v1904, 32
    %v1908 = vpop.permute.xlu0 %1907
    %v1910 = vmul.f32 %v1903, %v1908
    %1912 = vrot.lane.b32.xlu0 %v1910, 32
    %v1913 = vpop.permute.xlu0 %1912
    %v1915 = vadd.f32 %v1905, %v1913
    %v1916 = vtanh.pop %v1915
    %1918 = vrot.lane.b32.xlu0 %v1916, 32
    %v1919 = vpop.permute.xlu0 %1918
    %v1921 = vmul.f32 %v1903, %v1919
    %1923 = vrot.lane.b32.xlu0 %v1921, 64
    %v1924 = vpop.permute.xlu0 %1923
    %s1926 = scalar_lea.vmem [#allocation5], 8
    %1927 = vst.msk [vmem:[%s1926] sm:$0xff] %vm195, %v1924
    %1929 = vrot.lane.b32.xlu0 %v1915, 96
    %v1930 = vpop.permute.xlu0 %1929
    %s1932 = scalar_lea.vmem [#allocation5], 24
    %1933 = vst.msk [vmem:[%s1932] sm:$0xff] %vm195, %v1930
    // Predicated region
    $region34: #{tpu_custom_call.1} parent=1 // pred_check
      _
    $region35: #{tpu_custom_call.1} parent=1 // pred_check_branch
      %1935 = sbr.rel (0) target = $region37
    $region36: #{tpu_custom_call.1} parent=1 // pred_region
      %s1937 = ssub.s32 512, 512
      %1938 = vsyncadd [#allocation4], %s1937
      %s1939 = sshll.u32 [#allocation5], 4
      %s1940 = int_to_ptr.vmem [resolvable:$true] %s1939
      %1945 = dma.vmem_to_hbm [thread:$0]  %s1940, 512, %s7, [#allocation4], 128, 128, 8
    $region37: #{tpu_custom_call.1} parent=1 // pred_fallthru
      _
    // Predicated region
    $region38: #{tpu_custom_call.1} parent=1 // pred_check
      _
    $region39: #{tpu_custom_call.1} parent=1 // pred_check_branch
      %1947 = sbr.rel (0) target = $region41
    $region40: #{tpu_custom_call.1} parent=1 // pred_region
      %1948 = dma.done [#allocation4], 512
    $region41: #{tpu_custom_call.1} parent=1 // pred_fallthru
      _
    %1949 = vsyncpa [#allocation3], 1
    %1950 = vsyncpa [#allocation4], 1

</llo_original>
